<compile_context>
chip_gen: v5e
topology: v5e:2x2
jax: 0.10.0
libtpu: 0.0.40
codegen_flags: <defaults>
</compile_context>

<pallas_src>
import functools

import jax
import jax.numpy as jnp
from jax.experimental import pallas as pl
from jax.experimental.pallas import tpu as pltpu

LEAKY_SLOPE = 0.2
BN_EPS = 1e-5


def _ru(x, m):
    return (x + m - 1) // m * m


def _pad_last(v, cp, fill=0.0):
    v = v.astype(jnp.float32).reshape(1, -1)
    return jnp.pad(v, ((0, 0), (0, cp - v.shape[1])), constant_values=fill)


# ----------------------------- Pallas kernels ------------------------------ #

def _conv4x4_kernel(*refs, tap_plan, wout):
    """k=4 / pad=1 conv for one (image, output-row) grid step.

    refs = (*x_row_refs, w_ref, o_ref):
      x_row_refs[i] : (1, 1, Wsrc, Cinp) padded-input row (stride-2: parity slab row)
      w_ref         : (16, Cinp, Coutp) bf16, tap-major (ki*4 + kj)
      o_ref         : (1, 1, Wout, Coutp)
    tap_plan[t] = (x_ref_index, column_offset); every tap is a contiguous
    sublane window -> one MXU matmul, accumulated in f32.
    """
    x_refs = refs[:-2]
    w_ref = refs[-2]
    o_ref = refs[-1]

    acc = None
    for t, (xi, co) in enumerate(tap_plan):
        lhs = x_refs[xi][0, 0, co:co + wout, :]              # (Wout, Cinp) bf16
        part = jnp.dot(lhs, w_ref[t], preferred_element_type=jnp.float32)
        acc = part if acc is None else acc + part
    o_ref[0, 0, :, :] = acc.astype(o_ref.dtype)


def _bn_stats_kernel(x_ref, sum_ref, ssq_ref):
    """Per-channel sum / sum-of-squares; grid = (C_tiles 'parallel', N, H)."""
    @pl.when(jnp.logical_and(pl.program_id(1) == 0, pl.program_id(2) == 0))
    def _():
        sum_ref[...] = jnp.zeros_like(sum_ref)
        ssq_ref[...] = jnp.zeros_like(ssq_ref)

    x = x_ref[0, 0].astype(jnp.float32)                      # (Wout, 128)
    sum_ref[...] += jnp.sum(x, axis=0, keepdims=True)
    ssq_ref[...] += jnp.sum(x * x, axis=0, keepdims=True)


def _affine_leaky_pad_kernel(x_ref, sc_ref, sh_ref, o_ref, *, hout, wout, slope):
    """y = LeakyReLU(x*scale + shift), written into the zero-padded (H+2, W+2)
    bf16 layout the next conv consumes (border rows/cols stay zero)."""
    h = pl.program_id(1)
    o_ref[...] = jnp.zeros_like(o_ref)

    @pl.when(jnp.logical_and(h >= 1, h <= hout))
    def _():
        x = x_ref[0, 0].astype(jnp.float32)                  # (Wout, Cp)
        y = x * sc_ref[...] + sh_ref[...]
        y = jnp.where(y >= 0.0, y, y * slope)
        o_ref[0, 0, 1:1 + wout, :] = y.astype(o_ref.dtype)


def _avgpool_kernel(*refs, h_in, w_in, wout):
    """AvgPool2d(3, stride=2, pad=1, count_include_pad=False), one output row."""
    x_refs = refs[:6]        # (ki, parity) order: (0,e),(0,o),(1,e),(1,o),(2,e),(2,o)
    o_ref = refs[6]
    ho = pl.program_id(1)

    s = None
    for ki in range(3):
        for kj in range(3):
            src = x_refs[2 * ki + (kj % 2)]
            win = src[0, 0, kj // 2:kj // 2 + wout, :].astype(jnp.float32)
            s = win if s is None else s + win

    rcnt = (jnp.minimum(2 * ho + 2, h_in)
            - jnp.maximum(2 * ho - 1, 0)).astype(jnp.float32)
    wo = jax.lax.broadcasted_iota(jnp.int32, s.shape, 0)
    ccnt = (jnp.minimum(2 * wo + 2, w_in)
            - jnp.maximum(2 * wo - 1, 0)).astype(jnp.float32)
    o_ref[0, 0, :, :] = (s / (rcnt * ccnt)).astype(o_ref.dtype)


# ------------------------------- wrappers ----------------------------------- #

def conv4x4_pallas(xpad, w, *, stride, out_dtype=jnp.bfloat16):
    """xpad: (N, Hin+2, Win+2, Cinp) zero-padded NHWC activations (bf16), channel
    dim already padded (carried through the network).  w: (Cout, Cin, 4, 4)
    PyTorch-layout weights.  Returns raw conv output (N, Hout, Wout, Coutp)."""
    xpad = xpad.astype(jnp.bfloat16)
    N, Hp, Wp, Cinp = xpad.shape
    Cout, Cin = w.shape[0], w.shape[1]
    Coutp = _ru(Cout, 128)
    Hout = (Hp - 4) // stride + 1
    Wout = (Wp - 4) // stride + 1

    # (Cout, Cin, 4, 4) -> (16, Cinp, Coutp), tap-major, zero padded channels.
    wt = jnp.transpose(w, (2, 3, 1, 0)).reshape(16, Cin, Cout)
    wt = jnp.pad(wt, ((0, 0), (0, Cinp - Cin), (0, Coutp - Cout))).astype(jnp.bfloat16)

    if stride == 1:
        x_ops = [xpad] * 4
        x_specs = [pl.BlockSpec((1, 1, Wp, Cinp),
                                lambda n, h, ki=ki: (n, h + ki, 0, 0))
                   for ki in range(4)]
        tap_plan = tuple((ki, kj) for ki in range(4) for kj in range(4))
    else:
        # W-parity slabs: every (ki, kj) tap becomes a contiguous sublane window.
        xe = xpad[:, :, 0::2, :]
        xo = xpad[:, :, 1::2, :]
        We, Wo = xe.shape[2], xo.shape[2]
        x_ops, x_specs = [], []
        for ki in range(4):
            x_ops += [xe, xo]
            x_specs += [
                pl.BlockSpec((1, 1, We, Cinp),
                             lambda n, h, ki=ki: (n, 2 * h + ki, 0, 0)),
                pl.BlockSpec((1, 1, Wo, Cinp),
                             lambda n, h, ki=ki: (n, 2 * h + ki, 0, 0)),
            ]
        tap_plan = tuple((2 * ki + (kj % 2), kj // 2)
                         for ki in range(4) for kj in range(4))

    out_isz = jnp.dtype(out_dtype).itemsize
    cost = pl.CostEstimate(
        flops=2 * N * Hout * Wout * 16 * Cinp * Coutp,
        transcendentals=0,
        bytes_accessed=(4 * N * Hp * Wp * Cinp * 2
                        + 16 * Cinp * Coutp * 2
                        + N * Hout * Wout * Coutp * out_isz))

    return pl.pallas_call(
        functools.partial(_conv4x4_kernel, tap_plan=tap_plan, wout=Wout),
        out_shape=jax.ShapeDtypeStruct((N, Hout, Wout, Coutp), out_dtype),
        grid=(N, Hout),
        in_specs=x_specs + [pl.BlockSpec((16, Cinp, Coutp), lambda n, h: (0, 0, 0))],
        out_specs=pl.BlockSpec((1, 1, Wout, Coutp), lambda n, h: (n, h, 0, 0)),
        compiler_params=pltpu.CompilerParams(
            dimension_semantics=("parallel", "parallel"),
            vmem_limit_bytes=48 * 1024 * 1024),
        cost_estimate=cost,
    )(*x_ops, wt)


def bn_batch_stats(y):
    """y: (N, Hout, Wout, Cp) -> per-channel (sum, sumsq), each (1, Cp) f32."""
    N, Ho, Wo, Cp = y.shape
    TC = 128
    return pl.pallas_call(
        _bn_stats_kernel,
        out_shape=(jax.ShapeDtypeStruct((1, Cp), jnp.float32),
                   jax.ShapeDtypeStruct((1, Cp), jnp.float32)),
        grid=(Cp // TC, N, Ho),
        in_specs=[pl.BlockSpec((1, 1, Wo, TC), lambda c, n, h: (n, h, 0, c))],
        out_specs=(pl.BlockSpec((1, TC), lambda c, n, h: (0, c)),
                   pl.BlockSpec((1, TC), lambda c, n, h: (0, c))),
        compiler_params=pltpu.CompilerParams(
            dimension_semantics=("parallel", "arbitrary", "arbitrary")),
    )(y)


def affine_leaky_pad(y, scale, shift, *, slope=LEAKY_SLOPE):
    """Per-channel y*scale+shift -> LeakyReLU -> zero-padded bf16 (N, H+2, W+2, Cp)."""
    N, Ho, Wo, Cp = y.shape
    return pl.pallas_call(
        functools.partial(_affine_leaky_pad_kernel, hout=Ho, wout=Wo, slope=slope),
        out_shape=jax.ShapeDtypeStruct((N, Ho + 2, Wo + 2, Cp), jnp.bfloat16),
        grid=(N, Ho + 2),
        in_specs=[
            pl.BlockSpec((1, 1, Wo, Cp),
                         lambda n, h: (n, jnp.minimum(jnp.maximum(h - 1, 0), Ho - 1),
                                       0, 0)),
            pl.BlockSpec((1, Cp), lambda n, h: (0, 0)),
            pl.BlockSpec((1, Cp), lambda n, h: (0, 0)),
        ],
        out_specs=pl.BlockSpec((1, 1, Wo + 2, Cp), lambda n, h: (n, h, 0, 0)),
        compiler_params=pltpu.CompilerParams(
            dimension_semantics=("parallel", "parallel")),
    )(y, scale, shift)


def avgpool3_s2_pallas(x):
    """nn.AvgPool2d(3, stride=2, padding=1, count_include_pad=False), NHWC in,
    bf16 NHWC out (downsampled discriminator branch)."""
    N, H, W, C = x.shape
    Hout = (H - 1) // 2 + 1
    Wout = (W - 1) // 2 + 1
    xp = jnp.pad(x, ((0, 0), (1, 1), (1, 1), (0, 0)))
    xe = xp[:, :, 0::2, :]
    xo = xp[:, :, 1::2, :]
    We, Wo = xe.shape[2], xo.shape[2]

    x_ops, specs = [], []
    for ki in range(3):
        for arr, wdim in ((xe, We), (xo, Wo)):
            x_ops.append(arr)
            specs.append(pl.BlockSpec((1, 1, wdim, C),
                                      lambda n, h, ki=ki: (n, 2 * h + ki, 0, 0)))

    # TODO(synk): C=3 lanes -> masked stores; lane-dense repacking is skipped
    # because this array is tiny relative to the deep conv layers.
    return pl.pallas_call(
        functools.partial(_avgpool_kernel, h_in=H, w_in=W, wout=Wout),
        out_shape=jax.ShapeDtypeStruct((N, Hout, Wout, C), jnp.bfloat16),
        grid=(N, Hout),
        in_specs=specs,
        out_specs=pl.BlockSpec((1, 1, Wout, C), lambda n, h: (n, h, 0, 0)),
        compiler_params=pltpu.CompilerParams(
            dimension_semantics=("parallel", "parallel")),
    )(*x_ops)


# --------------------------- model definition ------------------------------ #

def init_nlayer_params(key, input_nc, ndf, n_layers):
    """Shapes follow NLayerDiscriminator (norm_layer=BatchNorm2d -> use_bias=False)."""
    keys = iter(jax.random.split(key, 16))

    def w_init(k, shape):
        return jax.random.normal(k, shape, jnp.float32) * 0.05

    params = [dict(kind="conv_leaky",
                   w=w_init(next(keys), (ndf, input_nc, 4, 4)),
                   b=w_init(next(keys), (ndf,)),
                   stride=2)]
    nf = ndf
    for _ in range(1, n_layers):
        nf_prev, nf = nf, min(nf * 2, 512)
        params.append(dict(kind="conv_bn_leaky",
                           w=w_init(next(keys), (nf, nf_prev, 4, 4)),
                           gamma=jnp.ones((nf,), jnp.float32),
                           beta=jnp.zeros((nf,), jnp.float32),
                           stride=2))
    nf_prev, nf = nf, min(nf * 2, 512)
    params.append(dict(kind="conv_bn_leaky",
                       w=w_init(next(keys), (nf, nf_prev, 4, 4)),
                       gamma=jnp.ones((nf,), jnp.float32),
                       beta=jnp.zeros((nf,), jnp.float32),
                       stride=1))
    params.append(dict(kind="conv",
                       w=w_init(next(keys), (1, nf, 4, 4)),
                       stride=1))
    return params


def nlayer_forward(params, x_nhwc):
    cur = None
    for p in params:
        if p["kind"] == "conv_leaky":
            xpad = jnp.pad(x_nhwc.astype(jnp.bfloat16),
                           ((0, 0), (1, 1), (1, 1), (0, 0)))
            y = conv4x4_pallas(xpad, p["w"], stride=p["stride"])
            cp = y.shape[-1]
            scale = jnp.ones((1, cp), jnp.float32)
            shift = _pad_last(p["b"], cp)                   # bias fused in epilogue
            cur = affine_leaky_pad(y, scale, shift)
        elif p["kind"] == "conv_bn_leaky":
            y = conv4x4_pallas(cur, p["w"], stride=p["stride"])   # bf16, bias-free
            n, ho, wo, cp = y.shape
            ssum, ssq = bn_batch_stats(y)
            cnt = float(n * ho * wo)
            mean = ssum / cnt
            var = jnp.maximum(ssq / cnt - mean * mean, 0.0)       # biased variance
            # TODO(synk): training-mode batch statistics only; BatchNorm2d .eval()
            # running statistics are not modeled.
            scale = _pad_last(p["gamma"], cp, fill=1.0) * jax.lax.rsqrt(var + BN_EPS)
            shift = _pad_last(p["beta"], cp) - mean * scale
            cur = affine_leaky_pad(y, scale, shift)
        else:  # final patch-logit conv: no bias, no norm, no activation, f32 out
            y = conv4x4_pallas(cur, p["w"], stride=p["stride"], out_dtype=jnp.float32)
            return y[..., :p["w"].shape[0]]
    return cur


def multiscale_forward(all_params, x_nchw):
    """MultiscaleDiscriminator.forward: layer(num_D-1-i) on downsampled input."""
    num_D = len(all_params)
    x = jnp.transpose(x_nchw, (0, 2, 3, 1))                 # NCHW -> NHWC
    result = []
    xd = x
    for i in range(num_D):
        p = all_params[num_D - 1 - i]
        out = nlayer_forward(p, xd)                         # (N, Hf, Wf, 1) f32
        result.append(jnp.transpose(out, (0, 3, 1, 2)))     # NHWC -> NCHW
        if i != num_D - 1:
            xd = avgpool3_s2_pallas(xd)
    return result


# --------------------------------- main ------------------------------------ #

if __name__ == "__main__":
    key = jax.random.PRNGKey(0)
    kx, k0, k1 = jax.random.split(key, 3)

    input_nc, ndf, n_layers, num_D = 3, 8, 3, 2
    N, H, W = 2, 48, 48  # 48x48 so the half-resolution branch yields a valid patch map

    x = jax.random.normal(kx, (N, input_nc, H, W), jnp.float32)  # NCHW, like PyTorch

    all_params = [
        init_nlayer_params(k0, input_nc, ndf, n_layers),  # 'layer0'
        init_nlayer_params(k1, input_nc, ndf, n_layers),  # 'layer1'
    ]

    outs = multiscale_forward(all_params, x)
    outs = jax.block_until_ready(outs)

    # expected: outs[0] from layer1 at full res (2,1,4,4); outs[1] from layer0 at half res (2,1,1,1)
    assert outs[0].shape == (2, 1, 4, 4), outs[0].shape
    assert outs[1].shape == (2, 1, 1, 1), outs[1].shape
    assert all(bool(jnp.all(jnp.isfinite(o))) for o in outs)

    print("KERNEL_OK")
</pallas_src>

<mosaic_0001>
module attributes {stable_mosaic.version = 11 : i64} {
  func.func @_conv4x4_kernel(%arg0: i32, %arg1: i32, %arg2: memref<1x1x25x3xbf16, #tpu.memory_space<vmem>>, %arg3: memref<1x1x25x3xbf16, #tpu.memory_space<vmem>>, %arg4: memref<1x1x25x3xbf16, #tpu.memory_space<vmem>>, %arg5: memref<1x1x25x3xbf16, #tpu.memory_space<vmem>>, %arg6: memref<1x1x25x3xbf16, #tpu.memory_space<vmem>>, %arg7: memref<1x1x25x3xbf16, #tpu.memory_space<vmem>>, %arg8: memref<1x1x25x3xbf16, #tpu.memory_space<vmem>>, %arg9: memref<1x1x25x3xbf16, #tpu.memory_space<vmem>>, %arg10: memref<16x3x128xbf16, #tpu.memory_space<vmem>>, %arg11: memref<1x1x24x128xbf16, #tpu.memory_space<vmem>>) attributes {dimension_semantics = [#tpu.dimension_semantics<parallel>, #tpu.dimension_semantics<parallel>], iteration_bounds = array<i64: 2, 24>, scalar_prefetch = 0 : i64, scratch_operands = 0 : i64, tpu.core_type = #tpu.core_type<tc>, window_params = [{transform_indices = @transform_0, window_bounds = array<i64: 1, 1, 25, 3>}, {transform_indices = @transform_1, window_bounds = array<i64: 1, 1, 25, 3>}, {transform_indices = @transform_2, window_bounds = array<i64: 1, 1, 25, 3>}, {transform_indices = @transform_3, window_bounds = array<i64: 1, 1, 25, 3>}, {transform_indices = @transform_4, window_bounds = array<i64: 1, 1, 25, 3>}, {transform_indices = @transform_5, window_bounds = array<i64: 1, 1, 25, 3>}, {transform_indices = @transform_6, window_bounds = array<i64: 1, 1, 25, 3>}, {transform_indices = @transform_7, window_bounds = array<i64: 1, 1, 25, 3>}, {pipeline_mode = #tpu.pipeline_mode<synchronous>, transform_indices = @transform_8, window_bounds = array<i64: 16, 3, 128>}, {transform_indices = @transform_9, window_bounds = array<i64: 1, 1, 24, 128>}]} {
    %c0 = arith.constant 0 : index
    %c0_0 = arith.constant 0 : index
    %c0_1 = arith.constant 0 : index
    %c0_2 = arith.constant 0 : index
    %0 = vector.load %arg2[%c0, %c0_0, %c0_1, %c0_2] : memref<1x1x25x3xbf16, #tpu.memory_space<vmem>>, vector<1x1x24x3xbf16>
    %1 = vector.shape_cast %0 : vector<1x1x24x3xbf16> to vector<24x3xbf16>
    %c0_3 = arith.constant 0 : index
    %c0_4 = arith.constant 0 : index
    %c0_5 = arith.constant 0 : index
    %2 = vector.load %arg10[%c0_3, %c0_4, %c0_5] : memref<16x3x128xbf16, #tpu.memory_space<vmem>>, vector<1x3x128xbf16>
    %3 = vector.shape_cast %2 : vector<1x3x128xbf16> to vector<3x128xbf16>
    %cst = arith.constant dense<0.000000e+00> : vector<24x128xf32>
    %4 = tpu.matmul %1, %3, %cst {dimension_numbers = #tpu.dot_dimension_numbers<[1], [0], [0], [1], [0, 0, 1, 1], [], []>} : vector<24x3xbf16>, vector<3x128xbf16>, vector<24x128xf32> -> vector<24x128xf32>
    %c0_6 = arith.constant 0 : index
    %c0_7 = arith.constant 0 : index
    %c0_8 = arith.constant 0 : index
    %c0_9 = arith.constant 0 : index
    %5 = vector.load %arg3[%c0_6, %c0_7, %c0_8, %c0_9] : memref<1x1x25x3xbf16, #tpu.memory_space<vmem>>, vector<1x1x24x3xbf16>
    %6 = vector.shape_cast %5 : vector<1x1x24x3xbf16> to vector<24x3xbf16>
    %c1 = arith.constant 1 : index
    %c0_10 = arith.constant 0 : index
    %c0_11 = arith.constant 0 : index
    %7 = vector.load %arg10[%c1, %c0_10, %c0_11] : memref<16x3x128xbf16, #tpu.memory_space<vmem>>, vector<1x3x128xbf16>
    %8 = vector.shape_cast %7 : vector<1x3x128xbf16> to vector<3x128xbf16>
    %cst_12 = arith.constant dense<0.000000e+00> : vector<24x128xf32>
    %9 = tpu.matmul %6, %8, %cst_12 {dimension_numbers = #tpu.dot_dimension_numbers<[1], [0], [0], [1], [0, 0, 1, 1], [], []>} : vector<24x3xbf16>, vector<3x128xbf16>, vector<24x128xf32> -> vector<24x128xf32>
    %10 = arith.addf %4, %9 : vector<24x128xf32>
    %c0_13 = arith.constant 0 : index
    %c0_14 = arith.constant 0 : index
    %c1_15 = arith.constant 1 : index
    %c0_16 = arith.constant 0 : index
    %11 = vector.load %arg2[%c0_13, %c0_14, %c1_15, %c0_16] : memref<1x1x25x3xbf16, #tpu.memory_space<vmem>>, vector<1x1x24x3xbf16>
    %12 = vector.shape_cast %11 : vector<1x1x24x3xbf16> to vector<24x3xbf16>
    %c2 = arith.constant 2 : index
    %c0_17 = arith.constant 0 : index
    %c0_18 = arith.constant 0 : index
    %13 = vector.load %arg10[%c2, %c0_17, %c0_18] : memref<16x3x128xbf16, #tpu.memory_space<vmem>>, vector<1x3x128xbf16>
    %14 = vector.shape_cast %13 : vector<1x3x128xbf16> to vector<3x128xbf16>
    %cst_19 = arith.constant dense<0.000000e+00> : vector<24x128xf32>
    %15 = tpu.matmul %12, %14, %cst_19 {dimension_numbers = #tpu.dot_dimension_numbers<[1], [0], [0], [1], [0, 0, 1, 1], [], []>} : vector<24x3xbf16>, vector<3x128xbf16>, vector<24x128xf32> -> vector<24x128xf32>
    %16 = arith.addf %10, %15 : vector<24x128xf32>
    %c0_20 = arith.constant 0 : index
    %c0_21 = arith.constant 0 : index
    %c1_22 = arith.constant 1 : index
    %c0_23 = arith.constant 0 : index
    %17 = vector.load %arg3[%c0_20, %c0_21, %c1_22, %c0_23] : memref<1x1x25x3xbf16, #tpu.memory_space<vmem>>, vector<1x1x24x3xbf16>
    %18 = vector.shape_cast %17 : vector<1x1x24x3xbf16> to vector<24x3xbf16>
    %c3 = arith.constant 3 : index
    %c0_24 = arith.constant 0 : index
    %c0_25 = arith.constant 0 : index
    %19 = vector.load %arg10[%c3, %c0_24, %c0_25] : memref<16x3x128xbf16, #tpu.memory_space<vmem>>, vector<1x3x128xbf16>
    %20 = vector.shape_cast %19 : vector<1x3x128xbf16> to vector<3x128xbf16>
    %cst_26 = arith.constant dense<0.000000e+00> : vector<24x128xf32>
    %21 = tpu.matmul %18, %20, %cst_26 {dimension_numbers = #tpu.dot_dimension_numbers<[1], [0], [0], [1], [0, 0, 1, 1], [], []>} : vector<24x3xbf16>, vector<3x128xbf16>, vector<24x128xf32> -> vector<24x128xf32>
    %22 = arith.addf %16, %21 : vector<24x128xf32>
    %c0_27 = arith.constant 0 : index
    %c0_28 = arith.constant 0 : index
    %c0_29 = arith.constant 0 : index
    %c0_30 = arith.constant 0 : index
    %23 = vector.load %arg4[%c0_27, %c0_28, %c0_29, %c0_30] : memref<1x1x25x3xbf16, #tpu.memory_space<vmem>>, vector<1x1x24x3xbf16>
    %24 = vector.shape_cast %23 : vector<1x1x24x3xbf16> to vector<24x3xbf16>
    %c4 = arith.constant 4 : index
    %c0_31 = arith.constant 0 : index
    %c0_32 = arith.constant 0 : index
    %25 = vector.load %arg10[%c4, %c0_31, %c0_32] : memref<16x3x128xbf16, #tpu.memory_space<vmem>>, vector<1x3x128xbf16>
    %26 = vector.shape_cast %25 : vector<1x3x128xbf16> to vector<3x128xbf16>
    %cst_33 = arith.constant dense<0.000000e+00> : vector<24x128xf32>
    %27 = tpu.matmul %24, %26, %cst_33 {dimension_numbers = #tpu.dot_dimension_numbers<[1], [0], [0], [1], [0, 0, 1, 1], [], []>} : vector<24x3xbf16>, vector<3x128xbf16>, vector<24x128xf32> -> vector<24x128xf32>
    %28 = arith.addf %22, %27 : vector<24x128xf32>
    %c0_34 = arith.constant 0 : index
    %c0_35 = arith.constant 0 : index
    %c0_36 = arith.constant 0 : index
    %c0_37 = arith.constant 0 : index
    %29 = vector.load %arg5[%c0_34, %c0_35, %c0_36, %c0_37] : memref<1x1x25x3xbf16, #tpu.memory_space<vmem>>, vector<1x1x24x3xbf16>
    %30 = vector.shape_cast %29 : vector<1x1x24x3xbf16> to vector<24x3xbf16>
    %c5 = arith.constant 5 : index
    %c0_38 = arith.constant 0 : index
    %c0_39 = arith.constant 0 : index
    %31 = vector.load %arg10[%c5, %c0_38, %c0_39] : memref<16x3x128xbf16, #tpu.memory_space<vmem>>, vector<1x3x128xbf16>
    %32 = vector.shape_cast %31 : vector<1x3x128xbf16> to vector<3x128xbf16>
    %cst_40 = arith.constant dense<0.000000e+00> : vector<24x128xf32>
    %33 = tpu.matmul %30, %32, %cst_40 {dimension_numbers = #tpu.dot_dimension_numbers<[1], [0], [0], [1], [0, 0, 1, 1], [], []>} : vector<24x3xbf16>, vector<3x128xbf16>, vector<24x128xf32> -> vector<24x128xf32>
    %34 = arith.addf %28, %33 : vector<24x128xf32>
    %c0_41 = arith.constant 0 : index
    %c0_42 = arith.constant 0 : index
    %c1_43 = arith.constant 1 : index
    %c0_44 = arith.constant 0 : index
    %35 = vector.load %arg4[%c0_41, %c0_42, %c1_43, %c0_44] : memref<1x1x25x3xbf16, #tpu.memory_space<vmem>>, vector<1x1x24x3xbf16>
    %36 = vector.shape_cast %35 : vector<1x1x24x3xbf16> to vector<24x3xbf16>
    %c6 = arith.constant 6 : index
    %c0_45 = arith.constant 0 : index
    %c0_46 = arith.constant 0 : index
    %37 = vector.load %arg10[%c6, %c0_45, %c0_46] : memref<16x3x128xbf16, #tpu.memory_space<vmem>>, vector<1x3x128xbf16>
    %38 = vector.shape_cast %37 : vector<1x3x128xbf16> to vector<3x128xbf16>
    %cst_47 = arith.constant dense<0.000000e+00> : vector<24x128xf32>
    %39 = tpu.matmul %36, %38, %cst_47 {dimension_numbers = #tpu.dot_dimension_numbers<[1], [0], [0], [1], [0, 0, 1, 1], [], []>} : vector<24x3xbf16>, vector<3x128xbf16>, vector<24x128xf32> -> vector<24x128xf32>
    %40 = arith.addf %34, %39 : vector<24x128xf32>
    %c0_48 = arith.constant 0 : index
    %c0_49 = arith.constant 0 : index
    %c1_50 = arith.constant 1 : index
    %c0_51 = arith.constant 0 : index
    %41 = vector.load %arg5[%c0_48, %c0_49, %c1_50, %c0_51] : memref<1x1x25x3xbf16, #tpu.memory_space<vmem>>, vector<1x1x24x3xbf16>
    %42 = vector.shape_cast %41 : vector<1x1x24x3xbf16> to vector<24x3xbf16>
    %c7 = arith.constant 7 : index
    %c0_52 = arith.constant 0 : index
    %c0_53 = arith.constant 0 : index
    %43 = vector.load %arg10[%c7, %c0_52, %c0_53] : memref<16x3x128xbf16, #tpu.memory_space<vmem>>, vector<1x3x128xbf16>
    %44 = vector.shape_cast %43 : vector<1x3x128xbf16> to vector<3x128xbf16>
    %cst_54 = arith.constant dense<0.000000e+00> : vector<24x128xf32>
    %45 = tpu.matmul %42, %44, %cst_54 {dimension_numbers = #tpu.dot_dimension_numbers<[1], [0], [0], [1], [0, 0, 1, 1], [], []>} : vector<24x3xbf16>, vector<3x128xbf16>, vector<24x128xf32> -> vector<24x128xf32>
    %46 = arith.addf %40, %45 : vector<24x128xf32>
    %c0_55 = arith.constant 0 : index
    %c0_56 = arith.constant 0 : index
    %c0_57 = arith.constant 0 : index
    %c0_58 = arith.constant 0 : index
    %47 = vector.load %arg6[%c0_55, %c0_56, %c0_57, %c0_58] : memref<1x1x25x3xbf16, #tpu.memory_space<vmem>>, vector<1x1x24x3xbf16>
    %48 = vector.shape_cast %47 : vector<1x1x24x3xbf16> to vector<24x3xbf16>
    %c8 = arith.constant 8 : index
    %c0_59 = arith.constant 0 : index
    %c0_60 = arith.constant 0 : index
    %49 = vector.load %arg10[%c8, %c0_59, %c0_60] : memref<16x3x128xbf16, #tpu.memory_space<vmem>>, vector<1x3x128xbf16>
    %50 = vector.shape_cast %49 : vector<1x3x128xbf16> to vector<3x128xbf16>
    %cst_61 = arith.constant dense<0.000000e+00> : vector<24x128xf32>
    %51 = tpu.matmul %48, %50, %cst_61 {dimension_numbers = #tpu.dot_dimension_numbers<[1], [0], [0], [1], [0, 0, 1, 1], [], []>} : vector<24x3xbf16>, vector<3x128xbf16>, vector<24x128xf32> -> vector<24x128xf32>
    %52 = arith.addf %46, %51 : vector<24x128xf32>
    %c0_62 = arith.constant 0 : index
    %c0_63 = arith.constant 0 : index
    %c0_64 = arith.constant 0 : index
    %c0_65 = arith.constant 0 : index
    %53 = vector.load %arg7[%c0_62, %c0_63, %c0_64, %c0_65] : memref<1x1x25x3xbf16, #tpu.memory_space<vmem>>, vector<1x1x24x3xbf16>
    %54 = vector.shape_cast %53 : vector<1x1x24x3xbf16> to vector<24x3xbf16>
    %c9 = arith.constant 9 : index
    %c0_66 = arith.constant 0 : index
    %c0_67 = arith.constant 0 : index
    %55 = vector.load %arg10[%c9, %c0_66, %c0_67] : memref<16x3x128xbf16, #tpu.memory_space<vmem>>, vector<1x3x128xbf16>
    %56 = vector.shape_cast %55 : vector<1x3x128xbf16> to vector<3x128xbf16>
    %cst_68 = arith.constant dense<0.000000e+00> : vector<24x128xf32>
    %57 = tpu.matmul %54, %56, %cst_68 {dimension_numbers = #tpu.dot_dimension_numbers<[1], [0], [0], [1], [0, 0, 1, 1], [], []>} : vector<24x3xbf16>, vector<3x128xbf16>, vector<24x128xf32> -> vector<24x128xf32>
    %58 = arith.addf %52, %57 : vector<24x128xf32>
    %c0_69 = arith.constant 0 : index
    %c0_70 = arith.constant 0 : index
    %c1_71 = arith.constant 1 : index
    %c0_72 = arith.constant 0 : index
    %59 = vector.load %arg6[%c0_69, %c0_70, %c1_71, %c0_72] : memref<1x1x25x3xbf16, #tpu.memory_space<vmem>>, vector<1x1x24x3xbf16>
    %60 = vector.shape_cast %59 : vector<1x1x24x3xbf16> to vector<24x3xbf16>
    %c10 = arith.constant 10 : index
    %c0_73 = arith.constant 0 : index
    %c0_74 = arith.constant 0 : index
    %61 = vector.load %arg10[%c10, %c0_73, %c0_74] : memref<16x3x128xbf16, #tpu.memory_space<vmem>>, vector<1x3x128xbf16>
    %62 = vector.shape_cast %61 : vector<1x3x128xbf16> to vector<3x128xbf16>
    %cst_75 = arith.constant dense<0.000000e+00> : vector<24x128xf32>
    %63 = tpu.matmul %60, %62, %cst_75 {dimension_numbers = #tpu.dot_dimension_numbers<[1], [0], [0], [1], [0, 0, 1, 1], [], []>} : vector<24x3xbf16>, vector<3x128xbf16>, vector<24x128xf32> -> vector<24x128xf32>
    %64 = arith.addf %58, %63 : vector<24x128xf32>
    %c0_76 = arith.constant 0 : index
    %c0_77 = arith.constant 0 : index
    %c1_78 = arith.constant 1 : index
    %c0_79 = arith.constant 0 : index
    %65 = vector.load %arg7[%c0_76, %c0_77, %c1_78, %c0_79] : memref<1x1x25x3xbf16, #tpu.memory_space<vmem>>, vector<1x1x24x3xbf16>
    %66 = vector.shape_cast %65 : vector<1x1x24x3xbf16> to vector<24x3xbf16>
    %c11 = arith.constant 11 : index
    %c0_80 = arith.constant 0 : index
    %c0_81 = arith.constant 0 : index
    %67 = vector.load %arg10[%c11, %c0_80, %c0_81] : memref<16x3x128xbf16, #tpu.memory_space<vmem>>, vector<1x3x128xbf16>
    %68 = vector.shape_cast %67 : vector<1x3x128xbf16> to vector<3x128xbf16>
    %cst_82 = arith.constant dense<0.000000e+00> : vector<24x128xf32>
    %69 = tpu.matmul %66, %68, %cst_82 {dimension_numbers = #tpu.dot_dimension_numbers<[1], [0], [0], [1], [0, 0, 1, 1], [], []>} : vector<24x3xbf16>, vector<3x128xbf16>, vector<24x128xf32> -> vector<24x128xf32>
    %70 = arith.addf %64, %69 : vector<24x128xf32>
    %c0_83 = arith.constant 0 : index
    %c0_84 = arith.constant 0 : index
    %c0_85 = arith.constant 0 : index
    %c0_86 = arith.constant 0 : index
    %71 = vector.load %arg8[%c0_83, %c0_84, %c0_85, %c0_86] : memref<1x1x25x3xbf16, #tpu.memory_space<vmem>>, vector<1x1x24x3xbf16>
    %72 = vector.shape_cast %71 : vector<1x1x24x3xbf16> to vector<24x3xbf16>
    %c12 = arith.constant 12 : index
    %c0_87 = arith.constant 0 : index
    %c0_88 = arith.constant 0 : index
    %73 = vector.load %arg10[%c12, %c0_87, %c0_88] : memref<16x3x128xbf16, #tpu.memory_space<vmem>>, vector<1x3x128xbf16>
    %74 = vector.shape_cast %73 : vector<1x3x128xbf16> to vector<3x128xbf16>
    %cst_89 = arith.constant dense<0.000000e+00> : vector<24x128xf32>
    %75 = tpu.matmul %72, %74, %cst_89 {dimension_numbers = #tpu.dot_dimension_numbers<[1], [0], [0], [1], [0, 0, 1, 1], [], []>} : vector<24x3xbf16>, vector<3x128xbf16>, vector<24x128xf32> -> vector<24x128xf32>
    %76 = arith.addf %70, %75 : vector<24x128xf32>
    %c0_90 = arith.constant 0 : index
    %c0_91 = arith.constant 0 : index
    %c0_92 = arith.constant 0 : index
    %c0_93 = arith.constant 0 : index
    %77 = vector.load %arg9[%c0_90, %c0_91, %c0_92, %c0_93] : memref<1x1x25x3xbf16, #tpu.memory_space<vmem>>, vector<1x1x24x3xbf16>
    %78 = vector.shape_cast %77 : vector<1x1x24x3xbf16> to vector<24x3xbf16>
    %c13 = arith.constant 13 : index
    %c0_94 = arith.constant 0 : index
    %c0_95 = arith.constant 0 : index
    %79 = vector.load %arg10[%c13, %c0_94, %c0_95] : memref<16x3x128xbf16, #tpu.memory_space<vmem>>, vector<1x3x128xbf16>
    %80 = vector.shape_cast %79 : vector<1x3x128xbf16> to vector<3x128xbf16>
    %cst_96 = arith.constant dense<0.000000e+00> : vector<24x128xf32>
    %81 = tpu.matmul %78, %80, %cst_96 {dimension_numbers = #tpu.dot_dimension_numbers<[1], [0], [0], [1], [0, 0, 1, 1], [], []>} : vector<24x3xbf16>, vector<3x128xbf16>, vector<24x128xf32> -> vector<24x128xf32>
    %82 = arith.addf %76, %81 : vector<24x128xf32>
    %c0_97 = arith.constant 0 : index
    %c0_98 = arith.constant 0 : index
    %c1_99 = arith.constant 1 : index
    %c0_100 = arith.constant 0 : index
    %83 = vector.load %arg8[%c0_97, %c0_98, %c1_99, %c0_100] : memref<1x1x25x3xbf16, #tpu.memory_space<vmem>>, vector<1x1x24x3xbf16>
    %84 = vector.shape_cast %83 : vector<1x1x24x3xbf16> to vector<24x3xbf16>
    %c14 = arith.constant 14 : index
    %c0_101 = arith.constant 0 : index
    %c0_102 = arith.constant 0 : index
    %85 = vector.load %arg10[%c14, %c0_101, %c0_102] : memref<16x3x128xbf16, #tpu.memory_space<vmem>>, vector<1x3x128xbf16>
    %86 = vector.shape_cast %85 : vector<1x3x128xbf16> to vector<3x128xbf16>
    %cst_103 = arith.constant dense<0.000000e+00> : vector<24x128xf32>
    %87 = tpu.matmul %84, %86, %cst_103 {dimension_numbers = #tpu.dot_dimension_numbers<[1], [0], [0], [1], [0, 0, 1, 1], [], []>} : vector<24x3xbf16>, vector<3x128xbf16>, vector<24x128xf32> -> vector<24x128xf32>
    %88 = arith.addf %82, %87 : vector<24x128xf32>
    %c0_104 = arith.constant 0 : index
    %c0_105 = arith.constant 0 : index
    %c1_106 = arith.constant 1 : index
    %c0_107 = arith.constant 0 : index
    %89 = vector.load %arg9[%c0_104, %c0_105, %c1_106, %c0_107] : memref<1x1x25x3xbf16, #tpu.memory_space<vmem>>, vector<1x1x24x3xbf16>
    %90 = vector.shape_cast %89 : vector<1x1x24x3xbf16> to vector<24x3xbf16>
    %c15 = arith.constant 15 : index
    %c0_108 = arith.constant 0 : index
    %c0_109 = arith.constant 0 : index
    %91 = vector.load %arg10[%c15, %c0_108, %c0_109] : memref<16x3x128xbf16, #tpu.memory_space<vmem>>, vector<1x3x128xbf16>
    %92 = vector.shape_cast %91 : vector<1x3x128xbf16> to vector<3x128xbf16>
    %cst_110 = arith.constant dense<0.000000e+00> : vector<24x128xf32>
    %93 = tpu.matmul %90, %92, %cst_110 {dimension_numbers = #tpu.dot_dimension_numbers<[1], [0], [0], [1], [0, 0, 1, 1], [], []>} : vector<24x3xbf16>, vector<3x128xbf16>, vector<24x128xf32> -> vector<24x128xf32>
    %94 = arith.addf %88, %93 : vector<24x128xf32>
    %95 = arith.truncf %94 : vector<24x128xf32> to vector<24x128xbf16>
    %c0_111 = arith.constant 0 : index
    %c0_112 = arith.constant 0 : index
    %c0_113 = arith.constant 0 : index
    %c0_114 = arith.constant 0 : index
    %96 = vector.load %arg11[%c0_111, %c0_112, %c0_113, %c0_114] : memref<1x1x24x128xbf16, #tpu.memory_space<vmem>>, vector<1x1x24x128xbf16>
    %97 = vector.shape_cast %96 : vector<1x1x24x128xbf16> to vector<24x128xbf16>
    %98 = vector.shape_cast %95 : vector<24x128xbf16> to vector<1x1x24x128xbf16>
    tpu.vector_store %arg11[%c0_111, %c0_112, %c0_113, %c0_114], %98 {strides = array<i32>} : memref<1x1x24x128xbf16, #tpu.memory_space<vmem>>, vector<1x1x24x128xbf16>,
    return
  }
  func.func @transform_0(%arg0: i32, %arg1: i32) -> (i32, i32, i32, i32) {
    %c2_i32 = arith.constant 2 : i32
    %0 = arith.muli %c2_i32, %arg1 : i32
    %c0_i32 = arith.constant 0 : i32
    %1 = arith.addi %0, %c0_i32 : i32
    %c0_i32_0 = arith.constant 0 : i32
    %c0_i32_1 = arith.constant 0 : i32
    %c0_i32_2 = arith.constant 0 : i32
    return %arg0, %1, %c0_i32_0, %c0_i32_1 : i32, i32, i32, i32
  }
  func.func @transform_1(%arg0: i32, %arg1: i32) -> (i32, i32, i32, i32) {
    %c2_i32 = arith.constant 2 : i32
    %0 = arith.muli %c2_i32, %arg1 : i32
    %c0_i32 = arith.constant 0 : i32
    %1 = arith.addi %0, %c0_i32 : i32
    %c0_i32_0 = arith.constant 0 : i32
    %c0_i32_1 = arith.constant 0 : i32
    %c0_i32_2 = arith.constant 0 : i32
    return %arg0, %1, %c0_i32_0, %c0_i32_1 : i32, i32, i32, i32
  }
  func.func @transform_2(%arg0: i32, %arg1: i32) -> (i32, i32, i32, i32) {
    %c2_i32 = arith.constant 2 : i32
    %0 = arith.muli %c2_i32, %arg1 : i32
    %c1_i32 = arith.constant 1 : i32
    %1 = arith.addi %0, %c1_i32 : i32
    %c0_i32 = arith.constant 0 : i32
    %c0_i32_0 = arith.constant 0 : i32
    %c0_i32_1 = arith.constant 0 : i32
    return %arg0, %1, %c0_i32, %c0_i32_0 : i32, i32, i32, i32
  }
  func.func @transform_3(%arg0: i32, %arg1: i32) -> (i32, i32, i32, i32) {
    %c2_i32 = arith.constant 2 : i32
    %0 = arith.muli %c2_i32, %arg1 : i32
    %c1_i32 = arith.constant 1 : i32
    %1 = arith.addi %0, %c1_i32 : i32
    %c0_i32 = arith.constant 0 : i32
    %c0_i32_0 = arith.constant 0 : i32
    %c0_i32_1 = arith.constant 0 : i32
    return %arg0, %1, %c0_i32, %c0_i32_0 : i32, i32, i32, i32
  }
  func.func @transform_4(%arg0: i32, %arg1: i32) -> (i32, i32, i32, i32) {
    %c2_i32 = arith.constant 2 : i32
    %0 = arith.muli %c2_i32, %arg1 : i32
    %c2_i32_0 = arith.constant 2 : i32
    %1 = arith.addi %0, %c2_i32_0 : i32
    %c0_i32 = arith.constant 0 : i32
    %c0_i32_1 = arith.constant 0 : i32
    %c0_i32_2 = arith.constant 0 : i32
    return %arg0, %1, %c0_i32, %c0_i32_1 : i32, i32, i32, i32
  }
  func.func @transform_5(%arg0: i32, %arg1: i32) -> (i32, i32, i32, i32) {
    %c2_i32 = arith.constant 2 : i32
    %0 = arith.muli %c2_i32, %arg1 : i32
    %c2_i32_0 = arith.constant 2 : i32
    %1 = arith.addi %0, %c2_i32_0 : i32
    %c0_i32 = arith.constant 0 : i32
    %c0_i32_1 = arith.constant 0 : i32
    %c0_i32_2 = arith.constant 0 : i32
    return %arg0, %1, %c0_i32, %c0_i32_1 : i32, i32, i32, i32
  }
  func.func @transform_6(%arg0: i32, %arg1: i32) -> (i32, i32, i32, i32) {
    %c2_i32 = arith.constant 2 : i32
    %0 = arith.muli %c2_i32, %arg1 : i32
    %c3_i32 = arith.constant 3 : i32
    %1 = arith.addi %0, %c3_i32 : i32
    %c0_i32 = arith.constant 0 : i32
    %c0_i32_0 = arith.constant 0 : i32
    %c0_i32_1 = arith.constant 0 : i32
    return %arg0, %1, %c0_i32, %c0_i32_0 : i32, i32, i32, i32
  }
  func.func @transform_7(%arg0: i32, %arg1: i32) -> (i32, i32, i32, i32) {
    %c2_i32 = arith.constant 2 : i32
    %0 = arith.muli %c2_i32, %arg1 : i32
    %c3_i32 = arith.constant 3 : i32
    %1 = arith.addi %0, %c3_i32 : i32
    %c0_i32 = arith.constant 0 : i32
    %c0_i32_0 = arith.constant 0 : i32
    %c0_i32_1 = arith.constant 0 : i32
    return %arg0, %1, %c0_i32, %c0_i32_0 : i32, i32, i32, i32
  }
  func.func @transform_8(%arg0: i32, %arg1: i32) -> (i32, i32, i32) {
    %c0_i32 = arith.constant 0 : i32
    %c0_i32_0 = arith.constant 0 : i32
    %c0_i32_1 = arith.constant 0 : i32
    %c0_i32_2 = arith.constant 0 : i32
    return %c0_i32, %c0_i32_0, %c0_i32_1 : i32, i32, i32
  }
  func.func @transform_9(%arg0: i32, %arg1: i32) -> (i32, i32, i32, i32) {
    %c0_i32 = arith.constant 0 : i32
    %c0_i32_0 = arith.constant 0 : i32
    %c0_i32_1 = arith.constant 0 : i32
    return %arg0, %arg1, %c0_i32, %c0_i32_0 : i32, i32, i32, i32
  }
}

</mosaic_0001>

<llo_original>
// kernel: tpu_custom_call.1
$region0: #{tpu_custom_call.1}
  #allocation0 [shape = 'u32[]', space=smem, size = 0x4, offset = 0x4, fixed_abs, tag = 'smem constant byte address 0x4 - core index']
  #allocation1 [shape = 'u32[72,128]{1,0:T(1,128)}', space=vmem, size = 0x9000, scoped, tag = 'internal scratch']
  %s0 = inlined_call_operand.vmem [shape: bf16[2,50,25,3], index: 0, kind: input, shape index: {}]
  %s1 = inlined_call_operand.vmem [shape: bf16[2,50,25,3], index: 1, kind: input, shape index: {}]
  %s2 = inlined_call_operand.vmem [shape: bf16[2,50,25,3], index: 2, kind: input, shape index: {}]
  %s3 = inlined_call_operand.vmem [shape: bf16[2,50,25,3], index: 3, kind: input, shape index: {}]
  %s4 = inlined_call_operand.vmem [shape: bf16[2,50,25,3], index: 4, kind: input, shape index: {}]
  %s5 = inlined_call_operand.vmem [shape: bf16[2,50,25,3], index: 5, kind: input, shape index: {}]
  %s6 = inlined_call_operand.vmem [shape: bf16[2,50,25,3], index: 6, kind: input, shape index: {}]
  %s7 = inlined_call_operand.vmem [shape: bf16[2,50,25,3], index: 7, kind: input, shape index: {}]
  %s8 = inlined_call_operand.vmem [shape: bf16[16,3,128], index: 8, kind: input, shape index: {}]
  %s9 = inlined_call_operand.hbm [shape: bf16[2,24,24,128], index: 9, kind: output, shape index: {}]
  %s10 = sld [smem:[#allocation0]]
  $region69: #{tpu_custom_call.1} parent=0
    _
  %s12 = ssub.s32 1, %s10
  %s13 = scalar_select 0, %s12, %s10
  $region1: #{tpu_custom_call.1} parent=0
    #allocation2 [shape = 'u8[12288]{0}', space=vmem, size = 0x3000, scoped, tag = 'output window, operand 0']
    #allocation3 [shape = 's32[2]{0}', space=sflag, size = 0x8, scoped, tag = 'scoped memory for tpu_custom_call.1']
    %14 = vsyncpa [#allocation3], 0
    %s15 = scalar_lea.sflag [#allocation3], 1
    %16 = vsyncpa %s15, 0
    loop: start=0, step=1, limit=50
    $region2: #{tpu_custom_call.1} parent=1 // loop_pre_header
      _
    $region3: #{tpu_custom_call.1} parent=1 // loop_header
      %s18 = sphi 0, %s22
      %p19 = scmp.ge.s32.totalorder %s18, 50
      %s25 = sphi 0, %s37
      %s26 = sphi 0, %s33
      %s27 = sphi 0, %s25
      %s28 = sphi 0, %s26
      %s29 = sphi 0, %s27
      %s30 = sphi 0, %s28
      %s44 = sphi 0, %s46
      %s47 = sphi 0, %s44
      %s48 = sphi 0, %s47
      %s64 = sphi 0, %s48
      %s74 = sphi 0, %s76
      %s77 = sphi 0, %s74
      %s78 = sphi 0, %s77
      %s94 = sphi 0, %s78
      %s106 = sphi 0, %s108
      %s109 = sphi 0, %s106
      %s110 = sphi 0, %s109
      %s126 = sphi 0, %s110
      %s138 = sphi 0, %s140
      %s141 = sphi 0, %s138
      %s142 = sphi 0, %s141
      %s158 = sphi 0, %s142
      %s170 = sphi 0, %s172
      %s173 = sphi 0, %s170
      %s174 = sphi 0, %s173
      %s190 = sphi 0, %s174
      %s202 = sphi 0, %s204
      %s205 = sphi 0, %s202
      %s206 = sphi 0, %s205
      %s222 = sphi 0, %s206
      %s234 = sphi 0, %s236
      %s237 = sphi 0, %s234
      %s238 = sphi 0, %s237
      %s254 = sphi 0, %s238
      %s266 = sphi 0, %s268
      %s269 = sphi 0, %s266
      %s270 = sphi 0, %s269
      %s286 = sphi 0, %s270
      %s290 = sphi 0, %s290
      %s292 = sphi 0, %s290
      %s293 = sphi 0, %s292
      %s307 = sphi 0, %s293
      %s315 = sphi 0, %s317
      %s318 = sphi 0, %s315
      %s319 = sphi 0, %s318
      %s335 = sphi 0, %s319
    $region4: #{tpu_custom_call.1} parent=1 // loop_header_branch
      %21 = sbr.rel (%p19) target = $region8
    $region5: #{tpu_custom_call.1} parent=1 // loop_body
      %s23 = ssub.s32 %s18, 1
      %s24 = ssub.s32 %s18, 2
      %s31 = sadd.s32 1, %s26
      %p32 = scmp.ge.s32.totalorder %s31, 24
      %s33 = scalar_select %p32, 0, %s31
      %s34 = sadd.s32 1, %s25
      %s35 = scalar_select %p32, %s34, %s25
      %p36 = scmp.ge.s32.totalorder %s35, 2
      %s37 = scalar_select %p36, 0, %s35
      %s38 = smul.u32 %s26, 2
      %s39 = smul.u32 %s33, 2
      %s40 = ssub.s32 %s25, %s37
      %s41 = ssub.s32 %s38, %s39
      %s42 = sor.u32 %s40, %s41
      %p43 = scmp.eq.s32.totalorder %s42, 0
      %s45 = sadd.s32 %s44, 1
      %s46 = scalar_select %p43, %s44, %s45
      %p49 = pneg %p43
      %p50 = scmp.eq.s32.totalorder %s18, 47
      %p51 = por %p49, %p50
      %p52 = scmp.ne.s32.totalorder %s44, %s47
      %p53 = scmp.eq.s32.totalorder %s18, 0
      %p54 = por %p52, %p53
      %p55 = scmp.ne.s32.totalorder %s44, %s47
      %p56 = scmp.eq.s32.totalorder %s23, 47
      %p57 = por %p55, %p56
      %p58 = scmp.ne.s32.totalorder %s47, %s48
      %p59 = scmp.eq.s32.totalorder %s23, 0
      %p60 = por %p58, %p59
      %p61 = scmp.ne.s32.totalorder %s47, %s48
      %p62 = scmp.eq.s32.totalorder %s24, 47
      %p63 = por %p61, %p62
      %p65 = scmp.ne.s32.totalorder %s48, %s64
      %p66 = scmp.eq.s32.totalorder %s24, 0
      %p67 = por %p65, %p66
      %s68 = smul.u32 %s26, 2
      %s69 = smul.u32 %s33, 2
      %s70 = ssub.s32 %s25, %s37
      %s71 = ssub.s32 %s68, %s69
      %s72 = sor.u32 %s70, %s71
      %p73 = scmp.eq.s32.totalorder %s72, 0
      %s75 = sadd.s32 %s74, 1
      %s76 = scalar_select %p73, %s74, %s75
      %p79 = pneg %p73
      %p80 = scmp.eq.s32.totalorder %s18, 47
      %p81 = por %p79, %p80
      %p82 = scmp.ne.s32.totalorder %s74, %s77
      %p83 = scmp.eq.s32.totalorder %s18, 0
      %p84 = por %p82, %p83
      %p85 = scmp.ne.s32.totalorder %s74, %s77
      %p86 = scmp.eq.s32.totalorder %s23, 47
      %p87 = por %p85, %p86
      %p88 = scmp.ne.s32.totalorder %s77, %s78
      %p89 = scmp.eq.s32.totalorder %s23, 0
      %p90 = por %p88, %p89
      %p91 = scmp.ne.s32.totalorder %s77, %s78
      %p92 = scmp.eq.s32.totalorder %s24, 47
      %p93 = por %p91, %p92
      %p95 = scmp.ne.s32.totalorder %s78, %s94
      %p96 = scmp.eq.s32.totalorder %s24, 0
      %p97 = por %p95, %p96
      %s98 = smul.u32 %s26, 2
      %s99 = sadd.s32 %s98, 1
      %s100 = smul.u32 %s33, 2
      %s101 = sadd.s32 %s100, 1
      %s102 = ssub.s32 %s25, %s37
      %s103 = ssub.s32 %s99, %s101
      %s104 = sor.u32 %s102, %s103
      %p105 = scmp.eq.s32.totalorder %s104, 0
      %s107 = sadd.s32 %s106, 1
      %s108 = scalar_select %p105, %s106, %s107
      %p111 = pneg %p105
      %p112 = scmp.eq.s32.totalorder %s18, 47
      %p113 = por %p111, %p112
      %p114 = scmp.ne.s32.totalorder %s106, %s109
      %p115 = scmp.eq.s32.totalorder %s18, 0
      %p116 = por %p114, %p115
      %p117 = scmp.ne.s32.totalorder %s106, %s109
      %p118 = scmp.eq.s32.totalorder %s23, 47
      %p119 = por %p117, %p118
      %p120 = scmp.ne.s32.totalorder %s109, %s110
      %p121 = scmp.eq.s32.totalorder %s23, 0
      %p122 = por %p120, %p121
      %p123 = scmp.ne.s32.totalorder %s109, %s110
      %p124 = scmp.eq.s32.totalorder %s24, 47
      %p125 = por %p123, %p124
      %p127 = scmp.ne.s32.totalorder %s110, %s126
      %p128 = scmp.eq.s32.totalorder %s24, 0
      %p129 = por %p127, %p128
      %s130 = smul.u32 %s26, 2
      %s131 = sadd.s32 %s130, 1
      %s132 = smul.u32 %s33, 2
      %s133 = sadd.s32 %s132, 1
      %s134 = ssub.s32 %s25, %s37
      %s135 = ssub.s32 %s131, %s133
      %s136 = sor.u32 %s134, %s135
      %p137 = scmp.eq.s32.totalorder %s136, 0
      %s139 = sadd.s32 %s138, 1
      %s140 = scalar_select %p137, %s138, %s139
      %p143 = pneg %p137
      %p144 = scmp.eq.s32.totalorder %s18, 47
      %p145 = por %p143, %p144
      %p146 = scmp.ne.s32.totalorder %s138, %s141
      %p147 = scmp.eq.s32.totalorder %s18, 0
      %p148 = por %p146, %p147
      %p149 = scmp.ne.s32.totalorder %s138, %s141
      %p150 = scmp.eq.s32.totalorder %s23, 47
      %p151 = por %p149, %p150
      %p152 = scmp.ne.s32.totalorder %s141, %s142
      %p153 = scmp.eq.s32.totalorder %s23, 0
      %p154 = por %p152, %p153
      %p155 = scmp.ne.s32.totalorder %s141, %s142
      %p156 = scmp.eq.s32.totalorder %s24, 47
      %p157 = por %p155, %p156
      %p159 = scmp.ne.s32.totalorder %s142, %s158
      %p160 = scmp.eq.s32.totalorder %s24, 0
      %p161 = por %p159, %p160
      %s162 = smul.u32 %s26, 2
      %s163 = sadd.s32 %s162, 2
      %s164 = smul.u32 %s33, 2
      %s165 = sadd.s32 %s164, 2
      %s166 = ssub.s32 %s25, %s37
      %s167 = ssub.s32 %s163, %s165
      %s168 = sor.u32 %s166, %s167
      %p169 = scmp.eq.s32.totalorder %s168, 0
      %s171 = sadd.s32 %s170, 1
      %s172 = scalar_select %p169, %s170, %s171
      %p175 = pneg %p169
      %p176 = scmp.eq.s32.totalorder %s18, 47
      %p177 = por %p175, %p176
      %p178 = scmp.ne.s32.totalorder %s170, %s173
      %p179 = scmp.eq.s32.totalorder %s18, 0
      %p180 = por %p178, %p179
      %p181 = scmp.ne.s32.totalorder %s170, %s173
      %p182 = scmp.eq.s32.totalorder %s23, 47
      %p183 = por %p181, %p182
      %p184 = scmp.ne.s32.totalorder %s173, %s174
      %p185 = scmp.eq.s32.totalorder %s23, 0
      %p186 = por %p184, %p185
      %p187 = scmp.ne.s32.totalorder %s173, %s174
      %p188 = scmp.eq.s32.totalorder %s24, 47
      %p189 = por %p187, %p188
      %p191 = scmp.ne.s32.totalorder %s174, %s190
      %p192 = scmp.eq.s32.totalorder %s24, 0
      %p193 = por %p191, %p192
      %s194 = smul.u32 %s26, 2
      %s195 = sadd.s32 %s194, 2
      %s196 = smul.u32 %s33, 2
      %s197 = sadd.s32 %s196, 2
      %s198 = ssub.s32 %s25, %s37
      %s199 = ssub.s32 %s195, %s197
      %s200 = sor.u32 %s198, %s199
      %p201 = scmp.eq.s32.totalorder %s200, 0
      %s203 = sadd.s32 %s202, 1
      %s204 = scalar_select %p201, %s202, %s203
      %p207 = pneg %p201
      %p208 = scmp.eq.s32.totalorder %s18, 47
      %p209 = por %p207, %p208
      %p210 = scmp.ne.s32.totalorder %s202, %s205
      %p211 = scmp.eq.s32.totalorder %s18, 0
      %p212 = por %p210, %p211
      %p213 = scmp.ne.s32.totalorder %s202, %s205
      %p214 = scmp.eq.s32.totalorder %s23, 47
      %p215 = por %p213, %p214
      %p216 = scmp.ne.s32.totalorder %s205, %s206
      %p217 = scmp.eq.s32.totalorder %s23, 0
      %p218 = por %p216, %p217
      %p219 = scmp.ne.s32.totalorder %s205, %s206
      %p220 = scmp.eq.s32.totalorder %s24, 47
      %p221 = por %p219, %p220
      %p223 = scmp.ne.s32.totalorder %s206, %s222
      %p224 = scmp.eq.s32.totalorder %s24, 0
      %p225 = por %p223, %p224
      %s226 = smul.u32 %s26, 2
      %s227 = sadd.s32 %s226, 3
      %s228 = smul.u32 %s33, 2
      %s229 = sadd.s32 %s228, 3
      %s230 = ssub.s32 %s25, %s37
      %s231 = ssub.s32 %s227, %s229
      %s232 = sor.u32 %s230, %s231
      %p233 = scmp.eq.s32.totalorder %s232, 0
      %s235 = sadd.s32 %s234, 1
      %s236 = scalar_select %p233, %s234, %s235
      %p239 = pneg %p233
      %p240 = scmp.eq.s32.totalorder %s18, 47
      %p241 = por %p239, %p240
      %p242 = scmp.ne.s32.totalorder %s234, %s237
      %p243 = scmp.eq.s32.totalorder %s18, 0
      %p244 = por %p242, %p243
      %p245 = scmp.ne.s32.totalorder %s234, %s237
      %p246 = scmp.eq.s32.totalorder %s23, 47
      %p247 = por %p245, %p246
      %p248 = scmp.ne.s32.totalorder %s237, %s238
      %p249 = scmp.eq.s32.totalorder %s23, 0
      %p250 = por %p248, %p249
      %p251 = scmp.ne.s32.totalorder %s237, %s238
      %p252 = scmp.eq.s32.totalorder %s24, 47
      %p253 = por %p251, %p252
      %p255 = scmp.ne.s32.totalorder %s238, %s254
      %p256 = scmp.eq.s32.totalorder %s24, 0
      %p257 = por %p255, %p256
      %s258 = smul.u32 %s26, 2
      %s259 = sadd.s32 %s258, 3
      %s260 = smul.u32 %s33, 2
      %s261 = sadd.s32 %s260, 3
      %s262 = ssub.s32 %s25, %s37
      %s263 = ssub.s32 %s259, %s261
      %s264 = sor.u32 %s262, %s263
      %p265 = scmp.eq.s32.totalorder %s264, 0
      %s267 = sadd.s32 %s266, 1
      %s268 = scalar_select %p265, %s266, %s267
      %p271 = pneg %p265
      %p272 = scmp.eq.s32.totalorder %s18, 47
      %p273 = por %p271, %p272
      %p274 = scmp.ne.s32.totalorder %s266, %s269
      %p275 = scmp.eq.s32.totalorder %s18, 0
      %p276 = por %p274, %p275
      %p277 = scmp.ne.s32.totalorder %s266, %s269
      %p278 = scmp.eq.s32.totalorder %s23, 47
      %p279 = por %p277, %p278
      %p280 = scmp.ne.s32.totalorder %s269, %s270
      %p281 = scmp.eq.s32.totalorder %s23, 0
      %p282 = por %p280, %p281
      %p283 = scmp.ne.s32.totalorder %s269, %s270
      %p284 = scmp.eq.s32.totalorder %s24, 47
      %p285 = por %p283, %p284
      %p287 = scmp.ne.s32.totalorder %s270, %s286
      %p288 = scmp.eq.s32.totalorder %s24, 0
      %p289 = por %p287, %p288
      %s291 = sadd.s32 %s290, 1
      %p294 = scmp.eq.s32.totalorder %s18, 47
      %p295 = scmp.ne.s32.totalorder %s290, %s292
      %p296 = scmp.eq.s32.totalorder %s18, 0
      %p297 = por %p295, %p296
      %p298 = scmp.ne.s32.totalorder %s290, %s292
      %p299 = scmp.eq.s32.totalorder %s23, 47
      %p300 = por %p298, %p299
      %p301 = scmp.ne.s32.totalorder %s292, %s293
      %p302 = scmp.eq.s32.totalorder %s23, 0
      %p303 = por %p301, %p302
      %p304 = scmp.ne.s32.totalorder %s292, %s293
      %p305 = scmp.eq.s32.totalorder %s24, 47
      %p306 = por %p304, %p305
      %p308 = scmp.ne.s32.totalorder %s293, %s307
      %p309 = scmp.eq.s32.totalorder %s24, 0
      %p310 = por %p308, %p309
      %s311 = ssub.s32 %s25, %s37
      %s312 = ssub.s32 %s26, %s33
      %s313 = sor.u32 %s311, %s312
      %p314 = scmp.eq.s32.totalorder %s313, 0
      %s316 = sadd.s32 %s315, 1
      %s317 = scalar_select %p314, %s315, %s316
      %p320 = pneg %p314
      %p321 = scmp.eq.s32.totalorder %s18, 47
      %p322 = por %p320, %p321
      %p323 = scmp.ne.s32.totalorder %s315, %s318
      %p324 = scmp.eq.s32.totalorder %s18, 0
      %p325 = por %p323, %p324
      %p326 = scmp.ne.s32.totalorder %s315, %s318
      %p327 = scmp.eq.s32.totalorder %s23, 47
      %p328 = por %p326, %p327
      %p329 = scmp.ne.s32.totalorder %s318, %s319
      %p330 = scmp.eq.s32.totalorder %s23, 0
      %p331 = por %p329, %p330
      %p332 = scmp.ne.s32.totalorder %s318, %s319
      %p333 = scmp.eq.s32.totalorder %s24, 47
      %p334 = por %p332, %p333
      %p336 = scmp.ne.s32.totalorder %s319, %s335
      %p337 = scmp.eq.s32.totalorder %s24, 0
      %p338 = por %p336, %p337
      %p339 = scmp.le.s32.totalorder 1, %s18
      %p340 = scmp.lt.s32.totalorder %s18, 49
      %p341 = pnand %p339, %p340
      %p342 = pneg %p341
      // Predicated region
      $region9: #{tpu_custom_call.1} parent=5 // pred_check
        _
      $region10: #{tpu_custom_call.1} parent=5 // pred_check_branch
        %344 = sbr.rel (%p341) target = $region12
      $region11: #{tpu_custom_call.1} parent=5 // pred_region
        %s345 = ssub.s32 %s18, 1
        // Predicated region
        $region13: #{tpu_custom_call.1} parent=11 // pred_check
          %p346 = pneg %p303
        $region14: #{tpu_custom_call.1} parent=11 // pred_check_branch
          %348 = sbr.rel (%p346) target = $region16
        $region15: #{tpu_custom_call.1} parent=11 // pred_region
          _
        $region16: #{tpu_custom_call.1} parent=11 // pred_fallthru
          _
      $region12: #{tpu_custom_call.1} parent=5 // pred_fallthru
        _
      %p349 = scmp.lt.s32.totalorder %s18, 48
      // Predicated region
      $region17: #{tpu_custom_call.1} parent=5 // pred_check
        %p350 = pneg %p349
      $region18: #{tpu_custom_call.1} parent=5 // pred_check_branch
        %352 = sbr.rel (%p350) target = $region20
      $region19: #{tpu_custom_call.1} parent=5 // pred_region
        // Predicated region
        $region21: #{tpu_custom_call.1} parent=19 // pred_check
          %p353 = pneg %p54
        $region22: #{tpu_custom_call.1} parent=19 // pred_check_branch
          %355 = sbr.rel (%p353) target = $region24
        $region23: #{tpu_custom_call.1} parent=19 // pred_region
          %s356 = smul.u32 %s26, 2
          %p357 = scmp.lt.s32.totalorder %s25, 1
          %s358 = scalar_select %p357, %s25, 1
          %p359 = scmp.lt.s32.totalorder %s356, 49
          %s360 = scalar_select %p359, %s356, 49
          %s361 = smul.addr %s360, 4
          %s362 = smul.addr %s358, 200
          %s363 = sadd.s32 %s361, %s362
          %s364 = smul.addr %s363, 4
          %s365 = scalar_lea.vmem %s0, %s364
          %s366 = smul.u32 %s26, 2
        $region24: #{tpu_custom_call.1} parent=19 // pred_fallthru
          _
        // Predicated region
        $region25: #{tpu_custom_call.1} parent=19 // pred_check
          %p367 = pneg %p84
        $region26: #{tpu_custom_call.1} parent=19 // pred_check_branch
          %369 = sbr.rel (%p367) target = $region28
        $region27: #{tpu_custom_call.1} parent=19 // pred_region
          %s370 = smul.u32 %s26, 2
          %p371 = scmp.lt.s32.totalorder %s25, 1
          %s372 = scalar_select %p371, %s25, 1
          %p373 = scmp.lt.s32.totalorder %s370, 49
          %s374 = scalar_select %p373, %s370, 49
          %s375 = smul.addr %s374, 4
          %s376 = smul.addr %s372, 200
          %s377 = sadd.s32 %s375, %s376
          %s378 = smul.addr %s377, 4
          %s379 = scalar_lea.vmem %s1, %s378
          %s380 = smul.u32 %s26, 2
        $region28: #{tpu_custom_call.1} parent=19 // pred_fallthru
          _
        // Predicated region
        $region29: #{tpu_custom_call.1} parent=19 // pred_check
          %p381 = pneg %p116
        $region30: #{tpu_custom_call.1} parent=19 // pred_check_branch
          %383 = sbr.rel (%p381) target = $region32
        $region31: #{tpu_custom_call.1} parent=19 // pred_region
          %s384 = smul.u32 %s26, 2
          %s385 = sadd.s32 %s384, 1
          %p386 = scmp.lt.s32.totalorder %s25, 1
          %s387 = scalar_select %p386, %s25, 1
          %p388 = scmp.lt.s32.totalorder %s385, 49
          %s389 = scalar_select %p388, %s385, 49
          %s390 = smul.addr %s389, 4
          %s391 = smul.addr %s387, 200
          %s392 = sadd.s32 %s390, %s391
          %s393 = smul.addr %s392, 4
          %s394 = scalar_lea.vmem %s2, %s393
          %s395 = smul.u32 %s26, 2
          %s396 = sadd.s32 %s395, 1
        $region32: #{tpu_custom_call.1} parent=19 // pred_fallthru
          _
        // Predicated region
        $region33: #{tpu_custom_call.1} parent=19 // pred_check
          %p397 = pneg %p148
        $region34: #{tpu_custom_call.1} parent=19 // pred_check_branch
          %399 = sbr.rel (%p397) target = $region36
        $region35: #{tpu_custom_call.1} parent=19 // pred_region
          %s400 = smul.u32 %s26, 2
          %s401 = sadd.s32 %s400, 1
          %p402 = scmp.lt.s32.totalorder %s25, 1
          %s403 = scalar_select %p402, %s25, 1
          %p404 = scmp.lt.s32.totalorder %s401, 49
          %s405 = scalar_select %p404, %s401, 49
          %s406 = smul.addr %s405, 4
          %s407 = smul.addr %s403, 200
          %s408 = sadd.s32 %s406, %s407
          %s409 = smul.addr %s408, 4
          %s410 = scalar_lea.vmem %s3, %s409
          %s411 = smul.u32 %s26, 2
          %s412 = sadd.s32 %s411, 1
        $region36: #{tpu_custom_call.1} parent=19 // pred_fallthru
          _
        // Predicated region
        $region37: #{tpu_custom_call.1} parent=19 // pred_check
          %p413 = pneg %p180
        $region38: #{tpu_custom_call.1} parent=19 // pred_check_branch
          %415 = sbr.rel (%p413) target = $region40
        $region39: #{tpu_custom_call.1} parent=19 // pred_region
          %s416 = smul.u32 %s26, 2
          %s417 = sadd.s32 %s416, 2
          %p418 = scmp.lt.s32.totalorder %s25, 1
          %s419 = scalar_select %p418, %s25, 1
          %p420 = scmp.lt.s32.totalorder %s417, 49
          %s421 = scalar_select %p420, %s417, 49
          %s422 = smul.addr %s421, 4
          %s423 = smul.addr %s419, 200
          %s424 = sadd.s32 %s422, %s423
          %s425 = smul.addr %s424, 4
          %s426 = scalar_lea.vmem %s4, %s425
          %s427 = smul.u32 %s26, 2
          %s428 = sadd.s32 %s427, 2
        $region40: #{tpu_custom_call.1} parent=19 // pred_fallthru
          _
        // Predicated region
        $region41: #{tpu_custom_call.1} parent=19 // pred_check
          %p429 = pneg %p212
        $region42: #{tpu_custom_call.1} parent=19 // pred_check_branch
          %431 = sbr.rel (%p429) target = $region44
        $region43: #{tpu_custom_call.1} parent=19 // pred_region
          %s432 = smul.u32 %s26, 2
          %s433 = sadd.s32 %s432, 2
          %p434 = scmp.lt.s32.totalorder %s25, 1
          %s435 = scalar_select %p434, %s25, 1
          %p436 = scmp.lt.s32.totalorder %s433, 49
          %s437 = scalar_select %p436, %s433, 49
          %s438 = smul.addr %s437, 4
          %s439 = smul.addr %s435, 200
          %s440 = sadd.s32 %s438, %s439
          %s441 = smul.addr %s440, 4
          %s442 = scalar_lea.vmem %s5, %s441
          %s443 = smul.u32 %s26, 2
          %s444 = sadd.s32 %s443, 2
        $region44: #{tpu_custom_call.1} parent=19 // pred_fallthru
          _
        // Predicated region
        $region45: #{tpu_custom_call.1} parent=19 // pred_check
          %p445 = pneg %p244
        $region46: #{tpu_custom_call.1} parent=19 // pred_check_branch
          %447 = sbr.rel (%p445) target = $region48
        $region47: #{tpu_custom_call.1} parent=19 // pred_region
          %s448 = smul.u32 %s26, 2
          %s449 = sadd.s32 %s448, 3
          %p450 = scmp.lt.s32.totalorder %s25, 1
          %s451 = scalar_select %p450, %s25, 1
          %p452 = scmp.lt.s32.totalorder %s449, 49
          %s453 = scalar_select %p452, %s449, 49
          %s454 = smul.addr %s453, 4
          %s455 = smul.addr %s451, 200
          %s456 = sadd.s32 %s454, %s455
          %s457 = smul.addr %s456, 4
          %s458 = scalar_lea.vmem %s6, %s457
          %s459 = smul.u32 %s26, 2
          %s460 = sadd.s32 %s459, 3
        $region48: #{tpu_custom_call.1} parent=19 // pred_fallthru
          _
        // Predicated region
        $region49: #{tpu_custom_call.1} parent=19 // pred_check
          %p461 = pneg %p276
        $region50: #{tpu_custom_call.1} parent=19 // pred_check_branch
          %463 = sbr.rel (%p461) target = $region52
        $region51: #{tpu_custom_call.1} parent=19 // pred_region
          %s464 = smul.u32 %s26, 2
          %s465 = sadd.s32 %s464, 3
          %p466 = scmp.lt.s32.totalorder %s25, 1
          %s467 = scalar_select %p466, %s25, 1
          %p468 = scmp.lt.s32.totalorder %s465, 49
          %s469 = scalar_select %p468, %s465, 49
          %s470 = smul.addr %s469, 4
          %s471 = smul.addr %s467, 200
          %s472 = sadd.s32 %s470, %s471
          %s473 = smul.addr %s472, 4
          %s474 = scalar_lea.vmem %s7, %s473
          %s475 = smul.u32 %s26, 2
          %s476 = sadd.s32 %s475, 3
        $region52: #{tpu_custom_call.1} parent=19 // pred_fallthru
          _
      $region20: #{tpu_custom_call.1} parent=5 // pred_fallthru
        _
      %p477 = scmp.le.s32.totalorder 1, %s18
      %p478 = scmp.lt.s32.totalorder %s18, 49
      %p479 = pnand %p477, %p478
      %p480 = pneg %p479
      // Predicated region
      $region53: #{tpu_custom_call.1} parent=5 // pred_check
        _
      $region54: #{tpu_custom_call.1} parent=5 // pred_check_branch
        %482 = sbr.rel (%p479) target = $region56
      $region55: #{tpu_custom_call.1} parent=5 // pred_region
        %s483 = ssub.s32 %s18, 1
        %s484 = smul.u32 %s28, 2
        %p485 = scmp.lt.s32.totalorder %s27, 1
        %s486 = scalar_select %p485, %s27, 1
        %p487 = scmp.lt.s32.totalorder %s484, 49
        %s488 = scalar_select %p487, %s484, 49
        %s489 = smul.addr %s488, 4
        %s490 = smul.addr %s486, 200
        %s491 = sadd.s32 %s489, %s490
        %s492 = smul.addr %s491, 4
        %s493 = scalar_lea.vmem %s0, %s492
        %p494 = pneg %p60
        %p495 = pneg %p57
        %s496 = smul.u32 %s28, 2
        %p497 = scmp.lt.s32.totalorder %s27, 1
        %s498 = scalar_select %p497, %s27, 1
        %p499 = scmp.lt.s32.totalorder %s496, 49
        %s500 = scalar_select %p499, %s496, 49
        %s501 = smul.addr %s500, 4
        %s502 = smul.addr %s498, 200
        %s503 = sadd.s32 %s501, %s502
        %s504 = smul.addr %s503, 4
        %s505 = scalar_lea.vmem %s1, %s504
        %p506 = pneg %p90
        %p507 = pneg %p87
        %s508 = smul.u32 %s28, 2
        %s509 = sadd.s32 %s508, 1
        %p510 = scmp.lt.s32.totalorder %s27, 1
        %s511 = scalar_select %p510, %s27, 1
        %p512 = scmp.lt.s32.totalorder %s509, 49
        %s513 = scalar_select %p512, %s509, 49
        %s514 = smul.addr %s513, 4
        %s515 = smul.addr %s511, 200
        %s516 = sadd.s32 %s514, %s515
        %s517 = smul.addr %s516, 4
        %s518 = scalar_lea.vmem %s2, %s517
        %p519 = pneg %p122
        %p520 = pneg %p119
        %s521 = smul.u32 %s28, 2
        %s522 = sadd.s32 %s521, 1
        %p523 = scmp.lt.s32.totalorder %s27, 1
        %s524 = scalar_select %p523, %s27, 1
        %p525 = scmp.lt.s32.totalorder %s522, 49
        %s526 = scalar_select %p525, %s522, 49
        %s527 = smul.addr %s526, 4
        %s528 = smul.addr %s524, 200
        %s529 = sadd.s32 %s527, %s528
        %s530 = smul.addr %s529, 4
        %s531 = scalar_lea.vmem %s3, %s530
        %p532 = pneg %p154
        %p533 = pneg %p151
        %s534 = smul.u32 %s28, 2
        %s535 = sadd.s32 %s534, 2
        %p536 = scmp.lt.s32.totalorder %s27, 1
        %s537 = scalar_select %p536, %s27, 1
        %p538 = scmp.lt.s32.totalorder %s535, 49
        %s539 = scalar_select %p538, %s535, 49
        %s540 = smul.addr %s539, 4
        %s541 = smul.addr %s537, 200
        %s542 = sadd.s32 %s540, %s541
        %s543 = smul.addr %s542, 4
        %s544 = scalar_lea.vmem %s4, %s543
        %p545 = pneg %p186
        %p546 = pneg %p183
        %s547 = smul.u32 %s28, 2
        %s548 = sadd.s32 %s547, 2
        %p549 = scmp.lt.s32.totalorder %s27, 1
        %s550 = scalar_select %p549, %s27, 1
        %p551 = scmp.lt.s32.totalorder %s548, 49
        %s552 = scalar_select %p551, %s548, 49
        %s553 = smul.addr %s552, 4
        %s554 = smul.addr %s550, 200
        %s555 = sadd.s32 %s553, %s554
        %s556 = smul.addr %s555, 4
        %s557 = scalar_lea.vmem %s5, %s556
        %p558 = pneg %p218
        %p559 = pneg %p215
        %s560 = smul.u32 %s28, 2
        %s561 = sadd.s32 %s560, 3
        %p562 = scmp.lt.s32.totalorder %s27, 1
        %s563 = scalar_select %p562, %s27, 1
        %p564 = scmp.lt.s32.totalorder %s561, 49
        %s565 = scalar_select %p564, %s561, 49
        %s566 = smul.addr %s565, 4
        %s567 = smul.addr %s563, 200
        %s568 = sadd.s32 %s566, %s567
        %s569 = smul.addr %s568, 4
        %s570 = scalar_lea.vmem %s6, %s569
        %p571 = pneg %p250
        %p572 = pneg %p247
        %s573 = smul.u32 %s28, 2
        %s574 = sadd.s32 %s573, 3
        %p575 = scmp.lt.s32.totalorder %s27, 1
        %s576 = scalar_select %p575, %s27, 1
        %p577 = scmp.lt.s32.totalorder %s574, 49
        %s578 = scalar_select %p577, %s574, 49
        %s579 = smul.addr %s578, 4
        %s580 = smul.addr %s576, 200
        %s581 = sadd.s32 %s579, %s580
        %s582 = smul.addr %s581, 4
        %s583 = scalar_lea.vmem %s7, %s582
        %p584 = pneg %p282
        %p585 = pneg %p279
        %p586 = pneg %p303
        %p587 = pneg %p300
        %p588 = pneg %p331
        %p589 = pneg %p328
        %s590 = sand.u32 %s318, 1
        %s591 = scalar_lea.sflag [#allocation3], %s590
        %s592 = sand.u32 %s318, 1
        %s593 = smul.addr %s592, 12
        %s594 = scalar_lea.vmem [#allocation2], %s593
        %s595 = smul.u32 %s28, 2
        %p596 = scmp.lt.s32.totalorder %s27, 1
        %s597 = scalar_select %p596, %s27, 1
        %p598 = scmp.lt.s32.totalorder %s595, 49
        %s599 = scalar_select %p598, %s595, 49
        %s600 = smul.addr %s599, 4
        %s601 = smul.addr %s597, 200
        %s602 = sadd.s32 %s600, %s601
        %s603 = smul.addr %s602, 4
        %s604 = scalar_lea.vmem %s0, %s603
        %s605 = smul.u32 %s28, 2
        %s606 = smul.u32 %s28, 2
        %p607 = scmp.lt.s32.totalorder %s27, 1
        %s608 = scalar_select %p607, %s27, 1
        %p609 = scmp.lt.s32.totalorder %s606, 49
        %s610 = scalar_select %p609, %s606, 49
        %s611 = smul.addr %s610, 4
        %s612 = smul.addr %s608, 200
        %s613 = sadd.s32 %s611, %s612
        %s614 = smul.addr %s613, 4
        %s615 = scalar_lea.vmem %s1, %s614
        %s616 = smul.u32 %s28, 2
        %s617 = smul.u32 %s28, 2
        %s618 = sadd.s32 %s617, 1
        %p619 = scmp.lt.s32.totalorder %s27, 1
        %s620 = scalar_select %p619, %s27, 1
        %p621 = scmp.lt.s32.totalorder %s618, 49
        %s622 = scalar_select %p621, %s618, 49
        %s623 = smul.addr %s622, 4
        %s624 = smul.addr %s620, 200
        %s625 = sadd.s32 %s623, %s624
        %s626 = smul.addr %s625, 4
        %s627 = scalar_lea.vmem %s2, %s626
        %s628 = smul.u32 %s28, 2
        %s629 = sadd.s32 %s628, 1
        %s630 = smul.u32 %s28, 2
        %s631 = sadd.s32 %s630, 1
        %p632 = scmp.lt.s32.totalorder %s27, 1
        %s633 = scalar_select %p632, %s27, 1
        %p634 = scmp.lt.s32.totalorder %s631, 49
        %s635 = scalar_select %p634, %s631, 49
        %s636 = smul.addr %s635, 4
        %s637 = smul.addr %s633, 200
        %s638 = sadd.s32 %s636, %s637
        %s639 = smul.addr %s638, 4
        %s640 = scalar_lea.vmem %s3, %s639
        %s641 = smul.u32 %s28, 2
        %s642 = sadd.s32 %s641, 1
        %s643 = smul.u32 %s28, 2
        %s644 = sadd.s32 %s643, 2
        %p645 = scmp.lt.s32.totalorder %s27, 1
        %s646 = scalar_select %p645, %s27, 1
        %p647 = scmp.lt.s32.totalorder %s644, 49
        %s648 = scalar_select %p647, %s644, 49
        %s649 = smul.addr %s648, 4
        %s650 = smul.addr %s646, 200
        %s651 = sadd.s32 %s649, %s650
        %s652 = smul.addr %s651, 4
        %s653 = scalar_lea.vmem %s4, %s652
        %s654 = smul.u32 %s28, 2
        %s655 = sadd.s32 %s654, 2
        %s656 = smul.u32 %s28, 2
        %s657 = sadd.s32 %s656, 2
        %p658 = scmp.lt.s32.totalorder %s27, 1
        %s659 = scalar_select %p658, %s27, 1
        %p660 = scmp.lt.s32.totalorder %s657, 49
        %s661 = scalar_select %p660, %s657, 49
        %s662 = smul.addr %s661, 4
        %s663 = smul.addr %s659, 200
        %s664 = sadd.s32 %s662, %s663
        %s665 = smul.addr %s664, 4
        %s666 = scalar_lea.vmem %s5, %s665
        %s667 = smul.u32 %s28, 2
        %s668 = sadd.s32 %s667, 2
        %s669 = smul.u32 %s28, 2
        %s670 = sadd.s32 %s669, 3
        %p671 = scmp.lt.s32.totalorder %s27, 1
        %s672 = scalar_select %p671, %s27, 1
        %p673 = scmp.lt.s32.totalorder %s670, 49
        %s674 = scalar_select %p673, %s670, 49
        %s675 = smul.addr %s674, 4
        %s676 = smul.addr %s672, 200
        %s677 = sadd.s32 %s675, %s676
        %s678 = smul.addr %s677, 4
        %s679 = scalar_lea.vmem %s6, %s678
        %s680 = smul.u32 %s28, 2
        %s681 = sadd.s32 %s680, 3
        %s682 = smul.u32 %s28, 2
        %s683 = sadd.s32 %s682, 3
        %p684 = scmp.lt.s32.totalorder %s27, 1
        %s685 = scalar_select %p684, %s27, 1
        %p686 = scmp.lt.s32.totalorder %s683, 49
        %s687 = scalar_select %p686, %s683, 49
        %s688 = smul.addr %s687, 4
        %s689 = smul.addr %s685, 200
        %s690 = sadd.s32 %s688, %s689
        %s691 = smul.addr %s690, 4
        %s692 = scalar_lea.vmem %s7, %s691
        %s693 = smul.u32 %s28, 2
        %s694 = sadd.s32 %s693, 3
        %v696 = vld [vmem:[%s604] sm:$0xf]
        %v697 = vld [vmem:[%s604 + $0x4] sm:$0xf]
        %v698 = vld [vmem:[%s604 + $0x8] sm:$0xf]
        %v699 = vld [vmem:[%s8] sm:$0x3]
        %v700 = vld [vmem:[%s615] sm:$0xf]
        %v701 = vld [vmem:[%s615 + $0x4] sm:$0xf]
        %v702 = vld [vmem:[%s615 + $0x8] sm:$0xf]
        %s703 = scalar_lea.vmem %s8, 2
        %v704 = vld [vmem:[%s703] sm:$0x3]
        %v708 = vunpack.c.l.b16 %v700
        %v709 = vunpack.c.l.b16 %v701
        %v710 = vunpack.c.l.b16 %v702
        %v711 = vpack.c.b16 %v709, %v708
        %v712 = vpack.c.b16 %v710, %v710
        %vm713 = vcmask 23552
        %v715 = vsel %vm713, %v711, 0
        %v718 = vsel %vm713, %v712, 0
        %vm720 = vcmask 1040384
        %vm721 = vcmask 1041408
        %v722 = vsel %vm720, 4294967295, 65535
        %v723 = vsel %vm721, %v722, 0
        %v725 = vand.u32 %v704, %v723
        %727 = vmatpush.bf16.msra.mxu0 0
        %728 = vmatpush.bf16.msra.mxu0 0
        %729 = vmatpush.bf16.msra.mxu0 0
        %730 = vmatpush.bf16.msra.mxu0 0
        %731 = vmatpush.bf16.msra.mxu0 0
        %732 = vmatpush.bf16.msra.mxu0 0
        %733 = vmatpush.bf16.msra.mxu0 0
        %734 = vmatpush.bf16.msra.mxu0 %v725
        %735 = vmatmul.bf16.gmra.mxu0 %v715
        %v736 = vpop.f32.mrf.mxu0
        %v737 = vadd.f32 0.0, %v736
        %v738 = vpop.f32.mrf.mxu0
        %v739 = vadd.f32 0.0, %v738
        %740 = vmatmul.bf16.gmra.mxu0 %v718
        %v741 = vpop.f32.mrf.mxu0
        %v742 = vadd.f32 0.0, %v741
        %v743 = vpop.f32.mrf.mxu0
        %744 = vdwg.mxu0
        %v748 = vunpack.c.l.b16 %v696
        %v749 = vunpack.c.l.b16 %v697
        %v750 = vunpack.c.l.b16 %v698
        %v751 = vpack.c.b16 %v749, %v748
        %v752 = vpack.c.b16 %v750, %v750
        %v754 = vsel %vm713, %v751, 0
        %v757 = vsel %vm713, %v752, 0
        %v760 = vand.u32 %v699, %v723
        %762 = vmatpush.bf16.msra.mxu0 0
        %763 = vmatpush.bf16.msra.mxu0 0
        %764 = vmatpush.bf16.msra.mxu0 0
        %765 = vmatpush.bf16.msra.mxu0 0
        %766 = vmatpush.bf16.msra.mxu0 0
        %767 = vmatpush.bf16.msra.mxu0 0
        %768 = vmatpush.bf16.msra.mxu0 0
        %769 = vmatpush.bf16.msra.mxu0 %v760
        %770 = vmatmul.bf16.gmra.mxu0 %v754
        %v771 = vpop.f32.mrf.mxu0
        %v772 = vadd.f32 %v737, %v771
        %v773 = vpop.f32.mrf.mxu0
        %v774 = vadd.f32 %v739, %v773
        %775 = vmatmul.bf16.gmra.mxu0 %v757
        %v776 = vpop.f32.mrf.mxu0
        %v777 = vadd.f32 %v742, %v776
        %v778 = vpop.f32.mrf.mxu0
        %779 = vdwg.mxu0
        %v780 = vld [vmem:[%s604] sm:$0xf]
        %v781 = vld [vmem:[%s604 + $0x4] sm:$0xf]
        %v782 = vld [vmem:[%s604 + $0x8] sm:$0xf]
        %v783 = vld [vmem:[%s604 + $0xc] sm:$0x1]
        %s784 = scalar_lea.vmem %s8, 4
        %v785 = vld [vmem:[%s784] sm:$0x3]
        %v790 = vunpack.c.l.b16 %v780
        %v791 = vunpack.c.l.b16 %v781
        %v792 = vunpack.c.l.b16 %v782
        %v793 = vunpack.c.l.b16 %v783
        %v794 = vpack.c.b16 %v791, %v790
        %v795 = vpack.c.b16 %v793, %v792
        %vm796 = vsmask.f32 7424
        %v798 = vshrl.u32 %v794, 16
        %v800 = vshll.u32 %v794, 16
        %v802 = vrot.slane %v800, 1
        %v803 = vor.u32 %v798, %v802
        %v805 = vshll.u32 %v795, 16
        %v807 = vrot.slane %v805, 1
        %v808 = vsel %vm796, %v803, %v807
        %v809 = vshrl.u32 %v795, 16
        %v811 = vor.u32 %v809, %v807
        %v813 = vsel %vm713, %v808, 0
        %v816 = vsel %vm713, %v811, 0
        %v819 = vand.u32 %v785, %v723
        %821 = vmatpush.bf16.msra.mxu0 0
        %822 = vmatpush.bf16.msra.mxu0 0
        %823 = vmatpush.bf16.msra.mxu0 0
        %824 = vmatpush.bf16.msra.mxu0 0
        %825 = vmatpush.bf16.msra.mxu0 0
        %826 = vmatpush.bf16.msra.mxu0 0
        %827 = vmatpush.bf16.msra.mxu0 0
        %828 = vmatpush.bf16.msra.mxu0 %v819
        %829 = vmatmul.bf16.gmra.mxu0 %v813
        %v830 = vpop.f32.mrf.mxu0
        %v831 = vadd.f32 0.0, %v830
        %v832 = vpop.f32.mrf.mxu0
        %v833 = vadd.f32 0.0, %v832
        %834 = vmatmul.bf16.gmra.mxu0 %v816
        %v835 = vpop.f32.mrf.mxu0
        %v836 = vadd.f32 0.0, %v835
        %v837 = vpop.f32.mrf.mxu0
        %838 = vdwg.mxu0
        %v839 = vadd.f32 %v772, %v831
        %v840 = vadd.f32 %v774, %v833
        %v841 = vadd.f32 %v777, %v836
        %v842 = vld [vmem:[%s615] sm:$0xf]
        %v843 = vld [vmem:[%s615 + $0x4] sm:$0xf]
        %v844 = vld [vmem:[%s615 + $0x8] sm:$0xf]
        %v845 = vld [vmem:[%s615 + $0xc] sm:$0x1]
        %s846 = scalar_lea.vmem %s8, 6
        %v847 = vld [vmem:[%s846] sm:$0x3]
        %v852 = vunpack.c.l.b16 %v842
        %v853 = vunpack.c.l.b16 %v843
        %v854 = vunpack.c.l.b16 %v844
        %v855 = vunpack.c.l.b16 %v845
        %v856 = vpack.c.b16 %v853, %v852
        %v857 = vpack.c.b16 %v855, %v854
        %v859 = vshrl.u32 %v856, 16
        %v861 = vshll.u32 %v856, 16
        %v863 = vrot.slane %v861, 1
        %v864 = vor.u32 %v859, %v863
        %v866 = vshll.u32 %v857, 16
        %v868 = vrot.slane %v866, 1
        %v869 = vsel %vm796, %v864, %v868
        %v870 = vshrl.u32 %v857, 16
        %v872 = vor.u32 %v870, %v868
        %v874 = vsel %vm713, %v869, 0
        %v877 = vsel %vm713, %v872, 0
        %v880 = vand.u32 %v847, %v723
        %882 = vmatpush.bf16.msra.mxu0 0
        %883 = vmatpush.bf16.msra.mxu0 0
        %884 = vmatpush.bf16.msra.mxu0 0
        %885 = vmatpush.bf16.msra.mxu0 0
        %886 = vmatpush.bf16.msra.mxu0 0
        %887 = vmatpush.bf16.msra.mxu0 0
        %888 = vmatpush.bf16.msra.mxu0 0
        %889 = vmatpush.bf16.msra.mxu0 %v880
        %890 = vmatmul.bf16.gmra.mxu0 %v874
        %v891 = vpop.f32.mrf.mxu0
        %v892 = vadd.f32 0.0, %v891
        %v893 = vpop.f32.mrf.mxu0
        %v894 = vadd.f32 0.0, %v893
        %895 = vmatmul.bf16.gmra.mxu0 %v877
        %v896 = vpop.f32.mrf.mxu0
        %v897 = vadd.f32 0.0, %v896
        %v898 = vpop.f32.mrf.mxu0
        %899 = vdwg.mxu0
        %v900 = vadd.f32 %v839, %v892
        %v901 = vadd.f32 %v840, %v894
        %v902 = vadd.f32 %v841, %v897
        %v903 = vld [vmem:[%s627] sm:$0xf]
        %v904 = vld [vmem:[%s627 + $0x4] sm:$0xf]
        %v905 = vld [vmem:[%s627 + $0x8] sm:$0xf]
        %s906 = scalar_lea.vmem %s8, 8
        %v907 = vld [vmem:[%s906] sm:$0x3]
        %v911 = vunpack.c.l.b16 %v903
        %v912 = vunpack.c.l.b16 %v904
        %v913 = vunpack.c.l.b16 %v905
        %v914 = vpack.c.b16 %v912, %v911
        %v915 = vpack.c.b16 %v913, %v913
        %v917 = vsel %vm713, %v914, 0
        %v920 = vsel %vm713, %v915, 0
        %v923 = vand.u32 %v907, %v723
        %925 = vmatpush.bf16.msra.mxu0 0
        %926 = vmatpush.bf16.msra.mxu0 0
        %927 = vmatpush.bf16.msra.mxu0 0
        %928 = vmatpush.bf16.msra.mxu0 0
        %929 = vmatpush.bf16.msra.mxu0 0
        %930 = vmatpush.bf16.msra.mxu0 0
        %931 = vmatpush.bf16.msra.mxu0 0
        %932 = vmatpush.bf16.msra.mxu0 %v923
        %933 = vmatmul.bf16.gmra.mxu0 %v917
        %v934 = vpop.f32.mrf.mxu0
        %v935 = vadd.f32 0.0, %v934
        %v936 = vpop.f32.mrf.mxu0
        %v937 = vadd.f32 0.0, %v936
        %938 = vmatmul.bf16.gmra.mxu0 %v920
        %v939 = vpop.f32.mrf.mxu0
        %v940 = vadd.f32 0.0, %v939
        %v941 = vpop.f32.mrf.mxu0
        %942 = vdwg.mxu0
        %v943 = vadd.f32 %v900, %v935
        %v944 = vadd.f32 %v901, %v937
        %v945 = vadd.f32 %v902, %v940
        %v946 = vld [vmem:[%s640] sm:$0xf]
        %v947 = vld [vmem:[%s640 + $0x4] sm:$0xf]
        %v948 = vld [vmem:[%s640 + $0x8] sm:$0xf]
        %s949 = scalar_lea.vmem %s8, 10
        %v950 = vld [vmem:[%s949] sm:$0x3]
        %v954 = vunpack.c.l.b16 %v946
        %v955 = vunpack.c.l.b16 %v947
        %v956 = vunpack.c.l.b16 %v948
        %v957 = vpack.c.b16 %v955, %v954
        %v958 = vpack.c.b16 %v956, %v956
        %v960 = vsel %vm713, %v957, 0
        %v963 = vsel %vm713, %v958, 0
        %v966 = vand.u32 %v950, %v723
        %968 = vmatpush.bf16.msra.mxu0 0
        %969 = vmatpush.bf16.msra.mxu0 0
        %970 = vmatpush.bf16.msra.mxu0 0
        %971 = vmatpush.bf16.msra.mxu0 0
        %972 = vmatpush.bf16.msra.mxu0 0
        %973 = vmatpush.bf16.msra.mxu0 0
        %974 = vmatpush.bf16.msra.mxu0 0
        %975 = vmatpush.bf16.msra.mxu0 %v966
        %976 = vmatmul.bf16.gmra.mxu0 %v960
        %v977 = vpop.f32.mrf.mxu0
        %v978 = vadd.f32 0.0, %v977
        %v979 = vpop.f32.mrf.mxu0
        %v980 = vadd.f32 0.0, %v979
        %981 = vmatmul.bf16.gmra.mxu0 %v963
        %v982 = vpop.f32.mrf.mxu0
        %v983 = vadd.f32 0.0, %v982
        %v984 = vpop.f32.mrf.mxu0
        %985 = vdwg.mxu0
        %v986 = vadd.f32 %v943, %v978
        %v987 = vadd.f32 %v944, %v980
        %v988 = vadd.f32 %v945, %v983
        %v989 = vld [vmem:[%s627] sm:$0xf]
        %v990 = vld [vmem:[%s627 + $0x4] sm:$0xf]
        %v991 = vld [vmem:[%s627 + $0x8] sm:$0xf]
        %v992 = vld [vmem:[%s627 + $0xc] sm:$0x1]
        %s993 = scalar_lea.vmem %s8, 12
        %v994 = vld [vmem:[%s993] sm:$0x3]
        %v999 = vunpack.c.l.b16 %v989
        %v1000 = vunpack.c.l.b16 %v990
        %v1001 = vunpack.c.l.b16 %v991
        %v1002 = vunpack.c.l.b16 %v992
        %v1003 = vpack.c.b16 %v1000, %v999
        %v1004 = vpack.c.b16 %v1002, %v1001
        %v1006 = vshrl.u32 %v1003, 16
        %v1008 = vshll.u32 %v1003, 16
        %v1010 = vrot.slane %v1008, 1
        %v1011 = vor.u32 %v1006, %v1010
        %v1013 = vshll.u32 %v1004, 16
        %v1015 = vrot.slane %v1013, 1
        %v1016 = vsel %vm796, %v1011, %v1015
        %v1017 = vshrl.u32 %v1004, 16
        %v1019 = vor.u32 %v1017, %v1015
        %v1021 = vsel %vm713, %v1016, 0
        %v1024 = vsel %vm713, %v1019, 0
        %v1027 = vand.u32 %v994, %v723
        %1029 = vmatpush.bf16.msra.mxu0 0
        %1030 = vmatpush.bf16.msra.mxu0 0
        %1031 = vmatpush.bf16.msra.mxu0 0
        %1032 = vmatpush.bf16.msra.mxu0 0
        %1033 = vmatpush.bf16.msra.mxu0 0
        %1034 = vmatpush.bf16.msra.mxu0 0
        %1035 = vmatpush.bf16.msra.mxu0 0
        %1036 = vmatpush.bf16.msra.mxu0 %v1027
        %1037 = vmatmul.bf16.gmra.mxu0 %v1021
        %v1038 = vpop.f32.mrf.mxu0
        %v1039 = vadd.f32 0.0, %v1038
        %v1040 = vpop.f32.mrf.mxu0
        %v1041 = vadd.f32 0.0, %v1040
        %1042 = vmatmul.bf16.gmra.mxu0 %v1024
        %v1043 = vpop.f32.mrf.mxu0
        %v1044 = vadd.f32 0.0, %v1043
        %v1045 = vpop.f32.mrf.mxu0
        %1046 = vdwg.mxu0
        %v1047 = vadd.f32 %v986, %v1039
        %v1048 = vadd.f32 %v987, %v1041
        %v1049 = vadd.f32 %v988, %v1044
        %v1050 = vld [vmem:[%s640] sm:$0xf]
        %v1051 = vld [vmem:[%s640 + $0x4] sm:$0xf]
        %v1052 = vld [vmem:[%s640 + $0x8] sm:$0xf]
        %v1053 = vld [vmem:[%s640 + $0xc] sm:$0x1]
        %s1054 = scalar_lea.vmem %s8, 14
        %v1055 = vld [vmem:[%s1054] sm:$0x3]
        %v1060 = vunpack.c.l.b16 %v1050
        %v1061 = vunpack.c.l.b16 %v1051
        %v1062 = vunpack.c.l.b16 %v1052
        %v1063 = vunpack.c.l.b16 %v1053
        %v1064 = vpack.c.b16 %v1061, %v1060
        %v1065 = vpack.c.b16 %v1063, %v1062
        %v1067 = vshrl.u32 %v1064, 16
        %v1069 = vshll.u32 %v1064, 16
        %v1071 = vrot.slane %v1069, 1
        %v1072 = vor.u32 %v1067, %v1071
        %v1074 = vshll.u32 %v1065, 16
        %v1076 = vrot.slane %v1074, 1
        %v1077 = vsel %vm796, %v1072, %v1076
        %v1078 = vshrl.u32 %v1065, 16
        %v1080 = vor.u32 %v1078, %v1076
        %v1082 = vsel %vm713, %v1077, 0
        %v1085 = vsel %vm713, %v1080, 0
        %v1088 = vand.u32 %v1055, %v723
        %1090 = vmatpush.bf16.msra.mxu0 0
        %1091 = vmatpush.bf16.msra.mxu0 0
        %1092 = vmatpush.bf16.msra.mxu0 0
        %1093 = vmatpush.bf16.msra.mxu0 0
        %1094 = vmatpush.bf16.msra.mxu0 0
        %1095 = vmatpush.bf16.msra.mxu0 0
        %1096 = vmatpush.bf16.msra.mxu0 0
        %1097 = vmatpush.bf16.msra.mxu0 %v1088
        %1098 = vmatmul.bf16.gmra.mxu0 %v1082
        %v1099 = vpop.f32.mrf.mxu0
        %v1100 = vadd.f32 0.0, %v1099
        %v1101 = vpop.f32.mrf.mxu0
        %v1102 = vadd.f32 0.0, %v1101
        %1103 = vmatmul.bf16.gmra.mxu0 %v1085
        %v1104 = vpop.f32.mrf.mxu0
        %v1105 = vadd.f32 0.0, %v1104
        %v1106 = vpop.f32.mrf.mxu0
        %1107 = vdwg.mxu0
        %v1108 = vadd.f32 %v1047, %v1100
        %v1109 = vadd.f32 %v1048, %v1102
        %v1110 = vadd.f32 %v1049, %v1105
        %v1111 = vld [vmem:[%s653] sm:$0xf]
        %v1112 = vld [vmem:[%s653 + $0x4] sm:$0xf]
        %v1113 = vld [vmem:[%s653 + $0x8] sm:$0xf]
        %s1114 = scalar_lea.vmem %s8, 16
        %v1115 = vld [vmem:[%s1114] sm:$0x3]
        %v1119 = vunpack.c.l.b16 %v1111
        %v1120 = vunpack.c.l.b16 %v1112
        %v1121 = vunpack.c.l.b16 %v1113
        %v1122 = vpack.c.b16 %v1120, %v1119
        %v1123 = vpack.c.b16 %v1121, %v1121
        %v1125 = vsel %vm713, %v1122, 0
        %v1128 = vsel %vm713, %v1123, 0
        %v1131 = vand.u32 %v1115, %v723
        %1133 = vmatpush.bf16.msra.mxu0 0
        %1134 = vmatpush.bf16.msra.mxu0 0
        %1135 = vmatpush.bf16.msra.mxu0 0
        %1136 = vmatpush.bf16.msra.mxu0 0
        %1137 = vmatpush.bf16.msra.mxu0 0
        %1138 = vmatpush.bf16.msra.mxu0 0
        %1139 = vmatpush.bf16.msra.mxu0 0
        %1140 = vmatpush.bf16.msra.mxu0 %v1131
        %1141 = vmatmul.bf16.gmra.mxu0 %v1125
        %v1142 = vpop.f32.mrf.mxu0
        %v1143 = vadd.f32 0.0, %v1142
        %v1144 = vpop.f32.mrf.mxu0
        %v1145 = vadd.f32 0.0, %v1144
        %1146 = vmatmul.bf16.gmra.mxu0 %v1128
        %v1147 = vpop.f32.mrf.mxu0
        %v1148 = vadd.f32 0.0, %v1147
        %v1149 = vpop.f32.mrf.mxu0
        %1150 = vdwg.mxu0
        %v1151 = vadd.f32 %v1108, %v1143
        %v1152 = vadd.f32 %v1109, %v1145
        %v1153 = vadd.f32 %v1110, %v1148
        %v1154 = vld [vmem:[%s666] sm:$0xf]
        %v1155 = vld [vmem:[%s666 + $0x4] sm:$0xf]
        %v1156 = vld [vmem:[%s666 + $0x8] sm:$0xf]
        %s1157 = scalar_lea.vmem %s8, 18
        %v1158 = vld [vmem:[%s1157] sm:$0x3]
        %v1162 = vunpack.c.l.b16 %v1154
        %v1163 = vunpack.c.l.b16 %v1155
        %v1164 = vunpack.c.l.b16 %v1156
        %v1165 = vpack.c.b16 %v1163, %v1162
        %v1166 = vpack.c.b16 %v1164, %v1164
        %v1168 = vsel %vm713, %v1165, 0
        %v1171 = vsel %vm713, %v1166, 0
        %v1174 = vand.u32 %v1158, %v723
        %1176 = vmatpush.bf16.msra.mxu0 0
        %1177 = vmatpush.bf16.msra.mxu0 0
        %1178 = vmatpush.bf16.msra.mxu0 0
        %1179 = vmatpush.bf16.msra.mxu0 0
        %1180 = vmatpush.bf16.msra.mxu0 0
        %1181 = vmatpush.bf16.msra.mxu0 0
        %1182 = vmatpush.bf16.msra.mxu0 0
        %1183 = vmatpush.bf16.msra.mxu0 %v1174
        %1184 = vmatmul.bf16.gmra.mxu0 %v1168
        %v1185 = vpop.f32.mrf.mxu0
        %v1186 = vadd.f32 0.0, %v1185
        %v1187 = vpop.f32.mrf.mxu0
        %v1188 = vadd.f32 0.0, %v1187
        %1189 = vmatmul.bf16.gmra.mxu0 %v1171
        %v1190 = vpop.f32.mrf.mxu0
        %v1191 = vadd.f32 0.0, %v1190
        %v1192 = vpop.f32.mrf.mxu0
        %1193 = vdwg.mxu0
        %v1194 = vadd.f32 %v1151, %v1186
        %v1195 = vadd.f32 %v1152, %v1188
        %v1196 = vadd.f32 %v1153, %v1191
        %v1197 = vld [vmem:[%s653] sm:$0xf]
        %v1198 = vld [vmem:[%s653 + $0x4] sm:$0xf]
        %v1199 = vld [vmem:[%s653 + $0x8] sm:$0xf]
        %v1200 = vld [vmem:[%s653 + $0xc] sm:$0x1]
        %s1201 = scalar_lea.vmem %s8, 20
        %v1202 = vld [vmem:[%s1201] sm:$0x3]
        %v1207 = vunpack.c.l.b16 %v1197
        %v1208 = vunpack.c.l.b16 %v1198
        %v1209 = vunpack.c.l.b16 %v1199
        %v1210 = vunpack.c.l.b16 %v1200
        %v1211 = vpack.c.b16 %v1208, %v1207
        %v1212 = vpack.c.b16 %v1210, %v1209
        %v1214 = vshrl.u32 %v1211, 16
        %v1216 = vshll.u32 %v1211, 16
        %v1218 = vrot.slane %v1216, 1
        %v1219 = vor.u32 %v1214, %v1218
        %v1221 = vshll.u32 %v1212, 16
        %v1223 = vrot.slane %v1221, 1
        %v1224 = vsel %vm796, %v1219, %v1223
        %v1225 = vshrl.u32 %v1212, 16
        %v1227 = vor.u32 %v1225, %v1223
        %v1229 = vsel %vm713, %v1224, 0
        %v1232 = vsel %vm713, %v1227, 0
        %v1235 = vand.u32 %v1202, %v723
        %1237 = vmatpush.bf16.msra.mxu0 0
        %1238 = vmatpush.bf16.msra.mxu0 0
        %1239 = vmatpush.bf16.msra.mxu0 0
        %1240 = vmatpush.bf16.msra.mxu0 0
        %1241 = vmatpush.bf16.msra.mxu0 0
        %1242 = vmatpush.bf16.msra.mxu0 0
        %1243 = vmatpush.bf16.msra.mxu0 0
        %1244 = vmatpush.bf16.msra.mxu0 %v1235
        %1245 = vmatmul.bf16.gmra.mxu0 %v1229
        %v1246 = vpop.f32.mrf.mxu0
        %v1247 = vadd.f32 0.0, %v1246
        %v1248 = vpop.f32.mrf.mxu0
        %v1249 = vadd.f32 0.0, %v1248
        %1250 = vmatmul.bf16.gmra.mxu0 %v1232
        %v1251 = vpop.f32.mrf.mxu0
        %v1252 = vadd.f32 0.0, %v1251
        %v1253 = vpop.f32.mrf.mxu0
        %1254 = vdwg.mxu0
        %v1255 = vadd.f32 %v1194, %v1247
        %v1256 = vadd.f32 %v1195, %v1249
        %v1257 = vadd.f32 %v1196, %v1252
        %v1258 = vld [vmem:[%s666] sm:$0xf]
        %v1259 = vld [vmem:[%s666 + $0x4] sm:$0xf]
        %v1260 = vld [vmem:[%s666 + $0x8] sm:$0xf]
        %v1261 = vld [vmem:[%s666 + $0xc] sm:$0x1]
        %s1262 = scalar_lea.vmem %s8, 22
        %v1263 = vld [vmem:[%s1262] sm:$0x3]
        %v1268 = vunpack.c.l.b16 %v1258
        %v1269 = vunpack.c.l.b16 %v1259
        %v1270 = vunpack.c.l.b16 %v1260
        %v1271 = vunpack.c.l.b16 %v1261
        %v1272 = vpack.c.b16 %v1269, %v1268
        %v1273 = vpack.c.b16 %v1271, %v1270
        %v1275 = vshrl.u32 %v1272, 16
        %v1277 = vshll.u32 %v1272, 16
        %v1279 = vrot.slane %v1277, 1
        %v1280 = vor.u32 %v1275, %v1279
        %v1282 = vshll.u32 %v1273, 16
        %v1284 = vrot.slane %v1282, 1
        %v1285 = vsel %vm796, %v1280, %v1284
        %v1286 = vshrl.u32 %v1273, 16
        %v1288 = vor.u32 %v1286, %v1284
        %v1290 = vsel %vm713, %v1285, 0
        %v1293 = vsel %vm713, %v1288, 0
        %v1296 = vand.u32 %v1263, %v723
        %1298 = vmatpush.bf16.msra.mxu0 0
        %1299 = vmatpush.bf16.msra.mxu0 0
        %1300 = vmatpush.bf16.msra.mxu0 0
        %1301 = vmatpush.bf16.msra.mxu0 0
        %1302 = vmatpush.bf16.msra.mxu0 0
        %1303 = vmatpush.bf16.msra.mxu0 0
        %1304 = vmatpush.bf16.msra.mxu0 0
        %1305 = vmatpush.bf16.msra.mxu0 %v1296
        %1306 = vmatmul.bf16.gmra.mxu0 %v1290
        %v1307 = vpop.f32.mrf.mxu0
        %v1308 = vadd.f32 0.0, %v1307
        %v1309 = vpop.f32.mrf.mxu0
        %v1310 = vadd.f32 0.0, %v1309
        %1311 = vmatmul.bf16.gmra.mxu0 %v1293
        %v1312 = vpop.f32.mrf.mxu0
        %v1313 = vadd.f32 0.0, %v1312
        %v1314 = vpop.f32.mrf.mxu0
        %1315 = vdwg.mxu0
        %v1316 = vadd.f32 %v1255, %v1308
        %v1317 = vadd.f32 %v1256, %v1310
        %v1318 = vadd.f32 %v1257, %v1313
        %v1319 = vld [vmem:[%s679] sm:$0xf]
        %v1320 = vld [vmem:[%s679 + $0x4] sm:$0xf]
        %v1321 = vld [vmem:[%s679 + $0x8] sm:$0xf]
        %s1322 = scalar_lea.vmem %s8, 24
        %v1323 = vld [vmem:[%s1322] sm:$0x3]
        %v1327 = vunpack.c.l.b16 %v1319
        %v1328 = vunpack.c.l.b16 %v1320
        %v1329 = vunpack.c.l.b16 %v1321
        %v1330 = vpack.c.b16 %v1328, %v1327
        %v1331 = vpack.c.b16 %v1329, %v1329
        %v1333 = vsel %vm713, %v1330, 0
        %v1336 = vsel %vm713, %v1331, 0
        %v1339 = vand.u32 %v1323, %v723
        %1341 = vmatpush.bf16.msra.mxu0 0
        %1342 = vmatpush.bf16.msra.mxu0 0
        %1343 = vmatpush.bf16.msra.mxu0 0
        %1344 = vmatpush.bf16.msra.mxu0 0
        %1345 = vmatpush.bf16.msra.mxu0 0
        %1346 = vmatpush.bf16.msra.mxu0 0
        %1347 = vmatpush.bf16.msra.mxu0 0
        %1348 = vmatpush.bf16.msra.mxu0 %v1339
        %1349 = vmatmul.bf16.gmra.mxu0 %v1333
        %v1350 = vpop.f32.mrf.mxu0
        %v1351 = vadd.f32 0.0, %v1350
        %v1352 = vpop.f32.mrf.mxu0
        %v1353 = vadd.f32 0.0, %v1352
        %1354 = vmatmul.bf16.gmra.mxu0 %v1336
        %v1355 = vpop.f32.mrf.mxu0
        %v1356 = vadd.f32 0.0, %v1355
        %v1357 = vpop.f32.mrf.mxu0
        %1358 = vdwg.mxu0
        %v1359 = vadd.f32 %v1316, %v1351
        %v1360 = vadd.f32 %v1317, %v1353
        %v1361 = vadd.f32 %v1318, %v1356
        %v1362 = vld [vmem:[%s692] sm:$0xf]
        %v1363 = vld [vmem:[%s692 + $0x4] sm:$0xf]
        %v1364 = vld [vmem:[%s692 + $0x8] sm:$0xf]
        %s1365 = scalar_lea.vmem %s8, 26
        %v1366 = vld [vmem:[%s1365] sm:$0x3]
        %v1370 = vunpack.c.l.b16 %v1362
        %v1371 = vunpack.c.l.b16 %v1363
        %v1372 = vunpack.c.l.b16 %v1364
        %v1373 = vpack.c.b16 %v1371, %v1370
        %v1374 = vpack.c.b16 %v1372, %v1372
        %v1376 = vsel %vm713, %v1373, 0
        %v1379 = vsel %vm713, %v1374, 0
        %v1382 = vand.u32 %v1366, %v723
        %1384 = vmatpush.bf16.msra.mxu0 0
        %1385 = vmatpush.bf16.msra.mxu0 0
        %1386 = vmatpush.bf16.msra.mxu0 0
        %1387 = vmatpush.bf16.msra.mxu0 0
        %1388 = vmatpush.bf16.msra.mxu0 0
        %1389 = vmatpush.bf16.msra.mxu0 0
        %1390 = vmatpush.bf16.msra.mxu0 0
        %1391 = vmatpush.bf16.msra.mxu0 %v1382
        %1392 = vmatmul.bf16.gmra.mxu0 %v1376
        %v1393 = vpop.f32.mrf.mxu0
        %v1394 = vadd.f32 0.0, %v1393
        %v1395 = vpop.f32.mrf.mxu0
        %v1396 = vadd.f32 0.0, %v1395
        %1397 = vmatmul.bf16.gmra.mxu0 %v1379
        %v1398 = vpop.f32.mrf.mxu0
        %v1399 = vadd.f32 0.0, %v1398
        %v1400 = vpop.f32.mrf.mxu0
        %1401 = vdwg.mxu0
        %v1402 = vadd.f32 %v1359, %v1394
        %v1403 = vadd.f32 %v1360, %v1396
        %v1404 = vadd.f32 %v1361, %v1399
        %v1405 = vld [vmem:[%s679] sm:$0xf]
        %v1406 = vld [vmem:[%s679 + $0x4] sm:$0xf]
        %v1407 = vld [vmem:[%s679 + $0x8] sm:$0xf]
        %v1408 = vld [vmem:[%s679 + $0xc] sm:$0x1]
        %s1409 = scalar_lea.vmem %s8, 28
        %v1410 = vld [vmem:[%s1409] sm:$0x3]
        %v1415 = vunpack.c.l.b16 %v1405
        %v1416 = vunpack.c.l.b16 %v1406
        %v1417 = vunpack.c.l.b16 %v1407
        %v1418 = vunpack.c.l.b16 %v1408
        %v1419 = vpack.c.b16 %v1416, %v1415
        %v1420 = vpack.c.b16 %v1418, %v1417
        %v1422 = vshrl.u32 %v1419, 16
        %v1424 = vshll.u32 %v1419, 16
        %v1426 = vrot.slane %v1424, 1
        %v1427 = vor.u32 %v1422, %v1426
        %v1429 = vshll.u32 %v1420, 16
        %v1431 = vrot.slane %v1429, 1
        %v1432 = vsel %vm796, %v1427, %v1431
        %v1433 = vshrl.u32 %v1420, 16
        %v1435 = vor.u32 %v1433, %v1431
        %v1437 = vsel %vm713, %v1432, 0
        %v1440 = vsel %vm713, %v1435, 0
        %v1443 = vand.u32 %v1410, %v723
        %1445 = vmatpush.bf16.msra.mxu0 0
        %1446 = vmatpush.bf16.msra.mxu0 0
        %1447 = vmatpush.bf16.msra.mxu0 0
        %1448 = vmatpush.bf16.msra.mxu0 0
        %1449 = vmatpush.bf16.msra.mxu0 0
        %1450 = vmatpush.bf16.msra.mxu0 0
        %1451 = vmatpush.bf16.msra.mxu0 0
        %1452 = vmatpush.bf16.msra.mxu0 %v1443
        %1453 = vmatmul.bf16.gmra.mxu0 %v1437
        %v1454 = vpop.f32.mrf.mxu0
        %v1455 = vadd.f32 0.0, %v1454
        %v1456 = vpop.f32.mrf.mxu0
        %v1457 = vadd.f32 0.0, %v1456
        %1458 = vmatmul.bf16.gmra.mxu0 %v1440
        %v1459 = vpop.f32.mrf.mxu0
        %v1460 = vadd.f32 0.0, %v1459
        %v1461 = vpop.f32.mrf.mxu0
        %1462 = vdwg.mxu0
        %v1463 = vadd.f32 %v1402, %v1455
        %v1464 = vadd.f32 %v1403, %v1457
        %v1465 = vadd.f32 %v1404, %v1460
        %v1466 = vld [vmem:[%s692] sm:$0xf]
        %v1467 = vld [vmem:[%s692 + $0x4] sm:$0xf]
        %v1468 = vld [vmem:[%s692 + $0x8] sm:$0xf]
        %v1469 = vld [vmem:[%s692 + $0xc] sm:$0x1]
        %s1470 = scalar_lea.vmem %s8, 30
        %v1471 = vld [vmem:[%s1470] sm:$0x3]
        %v1476 = vunpack.c.l.b16 %v1466
        %v1477 = vunpack.c.l.b16 %v1467
        %v1478 = vunpack.c.l.b16 %v1468
        %v1479 = vunpack.c.l.b16 %v1469
        %v1480 = vpack.c.b16 %v1477, %v1476
        %v1481 = vpack.c.b16 %v1479, %v1478
        %v1483 = vshrl.u32 %v1480, 16
        %v1485 = vshll.u32 %v1480, 16
        %v1487 = vrot.slane %v1485, 1
        %v1488 = vor.u32 %v1483, %v1487
        %v1490 = vshll.u32 %v1481, 16
        %v1492 = vrot.slane %v1490, 1
        %v1493 = vsel %vm796, %v1488, %v1492
        %v1494 = vshrl.u32 %v1481, 16
        %v1496 = vor.u32 %v1494, %v1492
        %v1498 = vsel %vm713, %v1493, 0
        %v1501 = vsel %vm713, %v1496, 0
        %v1504 = vand.u32 %v1471, %v723
        %1506 = vmatpush.bf16.msra.mxu0 0
        %1507 = vmatpush.bf16.msra.mxu0 0
        %1508 = vmatpush.bf16.msra.mxu0 0
        %1509 = vmatpush.bf16.msra.mxu0 0
        %1510 = vmatpush.bf16.msra.mxu0 0
        %1511 = vmatpush.bf16.msra.mxu0 0
        %1512 = vmatpush.bf16.msra.mxu0 0
        %1513 = vmatpush.bf16.msra.mxu0 %v1504
        %1514 = vmatmul.bf16.gmra.mxu0 %v1498
        %v1515 = vpop.f32.mrf.mxu0
        %v1516 = vadd.f32 0.0, %v1515
        %v1517 = vpop.f32.mrf.mxu0
        %v1518 = vadd.f32 0.0, %v1517
        %1519 = vmatmul.bf16.gmra.mxu0 %v1501
        %v1520 = vpop.f32.mrf.mxu0
        %v1521 = vadd.f32 0.0, %v1520
        %v1522 = vpop.f32.mrf.mxu0
        %1523 = vdwg.mxu0
        %v1524 = vadd.f32 %v1463, %v1516
        %v1525 = vadd.f32 %v1464, %v1518
        %v1526 = vadd.f32 %v1465, %v1521
        %v1527 = vpack.c.bf16 %v1524, %v1524
        %v1528 = vpack.c.bf16 %v1525, %v1525
        %v1529 = vpack.c.bf16 %v1526, %v1526
        %1530 = vst [vmem:[%s594] sm:$0xf] %v1527
        %1531 = vst [vmem:[%s594 + $0x4] sm:$0xf] %v1528
        %1532 = vst [vmem:[%s594 + $0x8] sm:$0xf] %v1529
        %s1533 = sand.u32 %s318, 1
        %s1534 = scalar_lea.sflag [#allocation3], %s1533
        %s1535 = sand.u32 %s318, 1
        %s1536 = smul.addr %s1535, 12
        %s1537 = scalar_lea.vmem [#allocation2], %s1536
        // Predicated region
        $region57: #{tpu_custom_call.1} parent=55 // pred_check
          %p1538 = pneg %p328
        $region58: #{tpu_custom_call.1} parent=55 // pred_check_branch
          %1540 = sbr.rel (%p1538) target = $region60
        $region59: #{tpu_custom_call.1} parent=55 // pred_region
          %1542 = vsyncadd %s1534, 0
          %s1543 = smul.addr %s28, 3
          %s1544 = smul.addr %s27, 72
          %s1545 = sadd.s32 %s1543, %s1544
          %s1546 = smul.addr %s1545, 4
          %s1547 = scalar_lea.hbm %s9, %s1546
          %s1548 = sshll.u32 %s1537, 4
          %s1549 = int_to_ptr.vmem [resolvable:$true] %s1548
          %s1550 = sshll.u32 %s1547, 4
          %s1551 = int_to_ptr.hbm [resolvable:$true] %s1550
          %1556 = dma.vmem_to_hbm [thread:$0]  %s1549, 192, %s1551, %s1534, 64, 64, 4
        $region60: #{tpu_custom_call.1} parent=55 // pred_fallthru
          _
      $region56: #{tpu_custom_call.1} parent=5 // pred_fallthru
        _
      %p1557 = scmp.le.s32.totalorder 2, %s18
      // Predicated region
      $region61: #{tpu_custom_call.1} parent=5 // pred_check
        %p1558 = pneg %p1557
      $region62: #{tpu_custom_call.1} parent=5 // pred_check_branch
        %1560 = sbr.rel (%p1558) target = $region64
      $region63: #{tpu_custom_call.1} parent=5 // pred_region
        %s1561 = ssub.s32 %s18, 2
        // Predicated region
        $region65: #{tpu_custom_call.1} parent=63 // pred_check
          %p1562 = pneg %p334
        $region66: #{tpu_custom_call.1} parent=63 // pred_check_branch
          %1564 = sbr.rel (%p1562) target = $region68
        $region67: #{tpu_custom_call.1} parent=63 // pred_region
          %s1565 = sand.u32 %s319, 1
          %s1566 = scalar_lea.sflag [#allocation3], %s1565
          %s1567 = sand.u32 %s319, 1
          %s1568 = smul.addr %s1567, 12
          %s1569 = scalar_lea.vmem [#allocation2], %s1568
          %1571 = dma.done %s1566, 192
        $region68: #{tpu_custom_call.1} parent=63 // pred_fallthru
          _
      $region64: #{tpu_custom_call.1} parent=5 // pred_fallthru
        _
    $region6: #{tpu_custom_call.1} parent=1 // loop_footer
      %s22 = sadd.s32 1, %s18
    $region7: #{tpu_custom_call.1} parent=1 // loop_footer_branch
      %17 = sbr.rel target = $region3
    $region8: #{tpu_custom_call.1} parent=1 // loop_exit
      _
    %1572 = vsyncpa [#allocation3], 1
    %s1573 = scalar_lea.sflag [#allocation3], 1
    %1574 = vsyncpa %s1573, 1

</llo_original>
